<compile_context>
chip_gen: v6e
topology: v6e:2x2x1
jax: 0.10.0
libtpu: 0.0.40
codegen_flags: <defaults>
</compile_context>

<pallas_src>
import jax
import jax.numpy as jnp
from jax import lax
from jax.experimental import pallas as pl
from jax.experimental.pallas import tpu as pltpu


def _round_up(x: int, m: int) -> int:
    return ((x + m - 1) // m) * m


def _tpu_generation_and_vmem():
    """Best-effort TPU generation + physical VMEM query (robust fallbacks)."""
    gen = 6
    try:
        kind = jax.devices()[0].device_kind.lower()
        for g in (7, 6, 5, 4):
            if f"v{g}" in kind:
                gen = g
                break
    except Exception:
        pass
    try:
        vmem_bytes = int(pltpu.get_tpu_info().vmem_capacity_bytes)
    except Exception:
        vmem_bytes = 64 * 1024 * 1024 if gen >= 7 else 128 * 1024 * 1024
    return gen, vmem_bytes


def _pick_row_tile(batch: int, d_pad: int, itemsize: int, gen: int, budget: int) -> int:
    """Generation-aware row-tile choice under a VMEM byte budget."""
    base = 128 if gen <= 5 else 256          # v5e MXU is 128-wide; v6e/v7x 256-wide
    if batch <= base:
        return _round_up(batch, 8)
    if gen <= 5:
        candidates = (128, 64, 32, 16, 8)
    elif gen == 6:
        candidates = (512, 256, 128, 64, 32, 16, 8)
    else:
        candidates = (256, 128, 64, 32, 16, 8)
    for tq in candidates:
        b_pad = _round_up(batch, tq)
        resident_keys = 2 * d_pad * b_pad * itemsize          # Buffered(1) keys
        query_tiles = 2 * 2 * tq * d_pad * itemsize           # double-buffered queries
        strips = 6 * tq * b_pad * 4                           # s/e f32 temporaries
        scratch = 4 * b_pad * 4 + (1 << 20)                   # accumulators + slack
        if resident_keys + query_tiles + strips + scratch <= budget:
            return tq
    return 8


def _make_seq_kernel(inv_t: float, batch: int, tq: int, b_pad: int, fast_exp: bool):
    """Sequential 3-quadrant variant (single TensorCore: v5e / v6e)."""
    n_pad = b_pad - batch
    pad_corr = 2.0 * float(n_pad)
    cdt = jnp.bfloat16 if fast_exp else jnp.float32

    def kernel(x1q_ref, x2q_ref, x1t_ref, x2t_ref, loss_ref,
               acc_loss_ref, acc_col_ref):
        i = pl.program_id(0)
        n_tiles = pl.num_programs(0)

        @pl.when(i == 0)
        def _init():
            acc_loss_ref[...] = jnp.zeros_like(acc_loss_ref)
            acc_col_ref[...] = jnp.zeros_like(acc_col_ref)

        x1q = x1q_ref[...]                      # [TQ, D]   (native dtype)
        x2q = x2q_ref[...]                      # [TQ, D]
        k1 = x1t_ref[...]                       # [D, B_pad] resident keys
        k2 = x2t_ref[...]                       # [D, B_pad]

        # Natural [TQ,D] @ [D,B] MXU matmuls (K on sublanes, N on lanes).
        s11 = jnp.dot(x1q, k1, preferred_element_type=jnp.float32) * inv_t
        s12 = jnp.dot(x1q, k2, preferred_element_type=jnp.float32) * inv_t
        s22 = jnp.dot(x2q, k2, preferred_element_type=jnp.float32) * inv_t
        # NOTE: s21 == s12.T; its contribution is recovered from the column
        # sums of e12 accumulated below (no 4th matmul / 4th exp strip).

        e11 = jnp.exp(s11.astype(cdt))
        e12 = jnp.exp(s12.astype(cdt))
        e22 = jnp.exp(s22.astype(cdt))

        # Elementwise positive-pair / self-similarity path in f32.
        x1f = x1q.astype(jnp.float32)
        x2f = x2q.astype(jnp.float32)
        d1 = jnp.exp(jnp.sum(x1f * x1f, axis=-1, keepdims=True) * inv_t)    # [TQ,1]
        pos = jnp.sum(x1f * x2f, axis=-1, keepdims=True) * inv_t            # [TQ,1]

        # Fused row reduction: neg1 = sum_j e11 + sum_j e12 in ONE XLU reduce.
        row_sum = jnp.sum(e11 + e12, axis=-1, keepdims=True, dtype=jnp.float32)
        neg1 = row_sum - d1 - pad_corr                                      # [TQ,1]
        tile_loss = jnp.log(neg1) - 2.0 * pos
        if n_pad:
            rows = i * tq + lax.broadcasted_iota(jnp.int32, (tq, 1), 0)
            tile_loss = jnp.where(rows < batch, tile_loss, 0.0)
        acc_loss_ref[...] += jnp.sum(tile_loss, keepdims=True)

        # Fused column reduction feeding the x2-half denominators: column sums
        # of e12 (cross view) and of e22 (same view; e22 is symmetric so its
        # column sums equal its row sums), accumulated across row tiles.
        acc_col_ref[...] += jnp.sum(e12 + e22, axis=0, keepdims=True,
                                    dtype=jnp.float32)                      # [1,B_pad]

        @pl.when(i == n_tiles - 1)
        def _finalize():
            k2f = x2t_ref[...].astype(jnp.float32)
            d2_all = jnp.exp(jnp.sum(k2f * k2f, axis=0, keepdims=True) * inv_t)  # [1,B_pad]
            neg2 = acc_col_ref[...] - d2_all - pad_corr
            log_neg2 = jnp.log(neg2)
            if n_pad:
                cols = lax.broadcasted_iota(jnp.int32, (1, b_pad), 1)
                log_neg2 = jnp.where(cols < batch, log_neg2, 0.0)
            total = acc_loss_ref[...] + jnp.sum(log_neg2, keepdims=True)
            loss_ref[...] = total * (1.0 / (2.0 * batch))

    return kernel


def _make_par_kernel(inv_t: float, batch: int, tq: int, b_pad: int, fast_exp: bool):
    """Parallel 4-quadrant variant (independent tiles; megacore on v7x)."""
    n_pad = b_pad - batch
    pad_corr = 2.0 * float(n_pad)
    cdt = jnp.bfloat16 if fast_exp else jnp.float32

    def kernel(x1q_ref, x2q_ref, x1t_ref, x2t_ref, out_ref):
        x1q = x1q_ref[...]
        x2q = x2q_ref[...]
        k1 = x1t_ref[...]
        k2 = x2t_ref[...]

        s11 = jnp.dot(x1q, k1, preferred_element_type=jnp.float32) * inv_t
        s12 = jnp.dot(x1q, k2, preferred_element_type=jnp.float32) * inv_t
        s21 = jnp.dot(x2q, k1, preferred_element_type=jnp.float32) * inv_t
        s22 = jnp.dot(x2q, k2, preferred_element_type=jnp.float32) * inv_t

        e1 = jnp.exp(s11.astype(cdt)) + jnp.exp(s12.astype(cdt))
        e2 = jnp.exp(s21.astype(cdt)) + jnp.exp(s22.astype(cdt))

        x1f = x1q.astype(jnp.float32)
        x2f = x2q.astype(jnp.float32)
        d1 = jnp.exp(jnp.sum(x1f * x1f, axis=-1, keepdims=True) * inv_t)
        d2 = jnp.exp(jnp.sum(x2f * x2f, axis=-1, keepdims=True) * inv_t)
        pos = jnp.sum(x1f * x2f, axis=-1, keepdims=True) * inv_t

        neg1 = jnp.sum(e1, axis=-1, keepdims=True, dtype=jnp.float32) - d1 - pad_corr
        neg2 = jnp.sum(e2, axis=-1, keepdims=True, dtype=jnp.float32) - d2 - pad_corr
        row_loss = jnp.log(neg1) + jnp.log(neg2) - 2.0 * pos                # [TQ,1]
        if n_pad:
            rows = pl.program_id(0) * tq + lax.broadcasted_iota(jnp.int32, (tq, 1), 0)
            row_loss = jnp.where(rows < batch, row_loss, 0.0)
        # Lane-dense store (wrapper reads lane 0 and reduces).
        out_ref[...] = jnp.broadcast_to(row_loss, (tq, 128))

    return kernel


def nt_xent_loss_pallas(x1: jax.Array, x2: jax.Array, temperature: float, *,
                        row_tile: int | None = None,
                        variant: str | None = None,
                        fast_exp: bool = False) -> jax.Array:
    assert x1.shape == x2.shape and x1.ndim == 2
    assert x1.dtype == x2.dtype
    batch, dim = x1.shape
    inv_t = 1.0 / float(temperature)

    gen, vmem_bytes = _tpu_generation_and_vmem()
    # ~54 MiB budget on 64-MiB (v7x) parts, ~108 MiB on 128-MiB (v5e/v6e) parts.
    budget = min(int(vmem_bytes * 0.85), 110 * 1024 * 1024)

    d_pad = _round_up(dim, 128)                       # lane-dense feature dim
    itemsize = jnp.dtype(x1.dtype).itemsize

    if row_tile is None:
        tq = _pick_row_tile(batch, d_pad, itemsize, gen, budget)
    else:
        tq = row_tile
    tq = max(8, _round_up(min(tq, _round_up(batch, 8)), 8))
    b_pad = _round_up(batch, tq)
    n_tiles = b_pad // tq

    if variant is None:
        # v7x has 2 TensorCores -> independent-tile parallel variant pays off.
        variant = "par" if (gen >= 7 and n_tiles > 1) else "seq"

    # Zero-pad rows (batch) and features: zero vectors only add exp(0)=1 terms,
    # which the kernels subtract analytically / mask out.
    if b_pad != batch or d_pad != dim:
        pad = ((0, b_pad - batch), (0, d_pad - dim))
        x1p = jnp.pad(x1, pad)
        x2p = jnp.pad(x2, pad)
    else:
        x1p, x2p = x1, x2
    # One-time HBM transposes so the MXU sees a natural [TQ,D] @ [D,B] matmul.
    x1t = jnp.transpose(x1p)                          # [d_pad, b_pad]
    x2t = jnp.transpose(x2p)

    if variant == "seq":
        kernel = _make_seq_kernel(inv_t, batch, tq, b_pad, fast_exp)
        out_shape = jax.ShapeDtypeStruct((1, 1), jnp.float32)
        out_specs = pl.BlockSpec((1, 1), lambda i: (0, 0))
        scratch = [pltpu.VMEM((1, 1), jnp.float32),        # scalar loss accumulator
                   pltpu.VMEM((1, b_pad), jnp.float32)]    # fused column-sum accumulator
        dimsem = ("arbitrary",)    # cross-tile column-sum accumulation is sequential
    elif variant == "par":
        kernel = _make_par_kernel(inv_t, batch, tq, b_pad, fast_exp)
        out_shape = jax.ShapeDtypeStruct((b_pad, 128), jnp.float32)
        out_specs = pl.BlockSpec((tq, 128), lambda i: (i, 0))
        scratch = []
        dimsem = ("parallel",)     # tiles are fully independent
    else:
        raise ValueError(f"unknown variant {variant!r}")

    def _run(buffered_keys: bool):
        key_kwargs = dict(pipeline_mode=pl.Buffered(1)) if buffered_keys else {}
        in_specs = [
            pl.BlockSpec((tq, d_pad), lambda i: (i, 0)),                    # x1 query tile
            pl.BlockSpec((tq, d_pad), lambda i: (i, 0)),                    # x2 query tile
            pl.BlockSpec((d_pad, b_pad), lambda i: (0, 0), **key_kwargs),   # x1^T keys
            pl.BlockSpec((d_pad, b_pad), lambda i: (0, 0), **key_kwargs),   # x2^T keys
        ]
        return pl.pallas_call(
            kernel,
            out_shape=out_shape,
            grid_spec=pltpu.PrefetchScalarGridSpec(
                num_scalar_prefetch=0,
                grid=(n_tiles,),
                in_specs=in_specs,
                out_specs=out_specs,
                scratch_shapes=scratch,
            ),
            compiler_params=pltpu.CompilerParams(
                dimension_semantics=dimsem,
                vmem_limit_bytes=budget,
            ),
        )(x1p, x2p, x1t, x2t)

    try:
        # Constant-index key blocks never change: single-buffer them to halve
        # their VMEM footprint (matters on v7x's 64 MiB VMEM).
        out = _run(buffered_keys=True)
    except Exception:
        # pl.Buffered(1) unsupported on this JAX build -> default buffering.
        out = _run(buffered_keys=False)

    if variant == "seq":
        return out[0, 0]
    return jnp.sum(out[:, 0]) / (2.0 * batch)


class NTXentLoss:
    """Drop-in analogue of the PyTorch NT_Xent_Loss module."""

    def __init__(self, temperature: float) -> None:
        self.temperature = temperature

    def __call__(self, x1: jax.Array, x2: jax.Array) -> jax.Array:
        return nt_xent_loss_pallas(x1, x2, self.temperature)


def nt_xent_loss_ref(x1, x2, temperature):
    # Pure-JAX reference mirroring the PyTorch nt_xent_loss semantics.
    z = jnp.concatenate([x1, x2], axis=0).astype(jnp.float32)
    n = z.shape[0]
    sim = jnp.exp(z @ z.T / temperature)
    mask = 1.0 - jnp.eye(n, dtype=jnp.float32)
    neg = jnp.sum(sim * mask, axis=-1)
    pos = jnp.exp(jnp.sum(x1.astype(jnp.float32) * x2.astype(jnp.float32),
                          axis=-1) / temperature)
    pos = jnp.concatenate([pos, pos], axis=0)
    return jnp.mean(-jnp.log(pos / neg))


if __name__ == "__main__":
    temperature = 0.5

    def make_inputs(seed, b, d):
        k1, k2 = jax.random.split(jax.random.PRNGKey(seed))
        a = jax.random.normal(k1, (b, d), dtype=jnp.float32)
        c = jax.random.normal(k2, (b, d), dtype=jnp.float32)
        # SimCLR projections are typically L2-normalized (glue, not kernel).
        a = a / jnp.linalg.norm(a, axis=-1, keepdims=True)
        c = c / jnp.linalg.norm(c, axis=-1, keepdims=True)
        return a, c

    # 1) Spec-sized case: batch=8 projections of hidden size 32, auto config.
    x1, x2 = make_inputs(0, 8, 32)
    loss = NTXentLoss(temperature)(x1, x2)
    jax.block_until_ready(loss)
    ref = nt_xent_loss_ref(x1, x2, temperature)
    assert jnp.allclose(loss, ref, rtol=1e-4, atol=1e-4), (loss, ref)

    # 2) Multi-tile sequential variant with row + feature padding (B=20 -> 32).
    y1, y2 = make_inputs(1, 20, 48)
    ref2 = nt_xent_loss_ref(y1, y2, temperature)
    loss2 = nt_xent_loss_pallas(y1, y2, temperature, row_tile=16, variant="seq")
    assert jnp.allclose(loss2, ref2, rtol=1e-4, atol=1e-4), (loss2, ref2)

    # 3) Parallel (megacore-friendly, 4-quadrant) variant on the same data.
    loss3 = nt_xent_loss_pallas(y1, y2, temperature, row_tile=16, variant="par")
    assert jnp.allclose(loss3, ref2, rtol=1e-4, atol=1e-4), (loss3, ref2)

    # 4) Opt-in bf16-exp fast path (looser tolerance by design).
    loss4 = nt_xent_loss_pallas(y1, y2, temperature, row_tile=16, variant="seq",
                                fast_exp=True)
    assert jnp.allclose(loss4, ref2, rtol=3e-2, atol=3e-2), (loss4, ref2)

    print("KERNEL_OK")
</pallas_src>

<mosaic_0001>
module attributes {stable_mosaic.version = 11 : i64} {
  func.func @kernel(%arg0: i32, %arg1: memref<8x128xf32, #tpu.memory_space<vmem>>, %arg2: memref<8x128xf32, #tpu.memory_space<vmem>>, %arg3: memref<128x8xf32, #tpu.memory_space<vmem>>, %arg4: memref<128x8xf32, #tpu.memory_space<vmem>>, %arg5: memref<1x1xf32, #tpu.memory_space<vmem>>, %arg6: memref<1x1xf32, #tpu.memory_space<vmem>>, %arg7: memref<1x8xf32, #tpu.memory_space<vmem>>) attributes {dimension_semantics = [#tpu.dimension_semantics<arbitrary>], iteration_bounds = array<i64: 1>, scalar_prefetch = 0 : i64, scratch_operands = 2 : i64, tpu.core_type = #tpu.core_type<tc>, window_params = [{transform_indices = @transform_0, window_bounds = array<i64: 8, 128>}, {transform_indices = @transform_1, window_bounds = array<i64: 8, 128>}, {pipeline_mode = #tpu.pipeline_mode<synchronous>, transform_indices = @transform_2, window_bounds = array<i64: 128, 8>}, {pipeline_mode = #tpu.pipeline_mode<synchronous>, transform_indices = @transform_3, window_bounds = array<i64: 128, 8>}, {pipeline_mode = #tpu.pipeline_mode<synchronous>, transform_indices = @transform_4, window_bounds = array<i64: 1, 1>}]} {
    %c0_i32 = arith.constant 0 : i32
    %0 = arith.cmpi eq, %arg0, %c0_i32 : i32
    %1 = arith.extui %0 : i1 to i32
    %c0_i32_0 = arith.constant 0 : i32
    %2 = arith.cmpi ne, %1, %c0_i32_0 : i32
    scf.if %2 {
      %cst_32 = arith.constant 0.000000e+00 : f32
      %57 = vector.broadcast %cst_32 : f32 to vector<1x1xf32>
      %c0_33 = arith.constant 0 : index
      %c0_34 = arith.constant 0 : index
      %58 = vector.load %arg6[%c0_33, %c0_34] : memref<1x1xf32, #tpu.memory_space<vmem>>, vector<1x1xf32>
      tpu.vector_store %arg6[%c0_33, %c0_34], %57 {strides = array<i32>} : memref<1x1xf32, #tpu.memory_space<vmem>>, vector<1x1xf32>,
      %cst_35 = arith.constant 0.000000e+00 : f32
      %59 = vector.broadcast %cst_35 : f32 to vector<1x8xf32>
      %c0_36 = arith.constant 0 : index
      %c0_37 = arith.constant 0 : index
      %60 = vector.load %arg7[%c0_36, %c0_37] : memref<1x8xf32, #tpu.memory_space<vmem>>, vector<1x8xf32>
      tpu.vector_store %arg7[%c0_36, %c0_37], %59 {strides = array<i32>} : memref<1x8xf32, #tpu.memory_space<vmem>>, vector<1x8xf32>,
    } else {
    }
    %c0 = arith.constant 0 : index
    %c0_1 = arith.constant 0 : index
    %3 = vector.load %arg1[%c0, %c0_1] : memref<8x128xf32, #tpu.memory_space<vmem>>, vector<8x128xf32>
    %c0_2 = arith.constant 0 : index
    %c0_3 = arith.constant 0 : index
    %4 = vector.load %arg2[%c0_2, %c0_3] : memref<8x128xf32, #tpu.memory_space<vmem>>, vector<8x128xf32>
    %c0_4 = arith.constant 0 : index
    %c0_5 = arith.constant 0 : index
    %5 = vector.load %arg3[%c0_4, %c0_5] : memref<128x8xf32, #tpu.memory_space<vmem>>, vector<128x8xf32>
    %c0_6 = arith.constant 0 : index
    %c0_7 = arith.constant 0 : index
    %6 = vector.load %arg4[%c0_6, %c0_7] : memref<128x8xf32, #tpu.memory_space<vmem>>, vector<128x8xf32>
    %cst = arith.constant dense<0.000000e+00> : vector<8x8xf32>
    %7 = tpu.matmul %3, %5, %cst {dimension_numbers = #tpu.dot_dimension_numbers<[1], [0], [0], [1], [0, 0, 1, 1], [], []>} : vector<8x128xf32>, vector<128x8xf32>, vector<8x8xf32> -> vector<8x8xf32>
    %cst_8 = arith.constant 2.000000e+00 : f32
    %8 = vector.broadcast %cst_8 : f32 to vector<8x8xf32>
    %9 = arith.mulf %7, %8 : vector<8x8xf32>
    %cst_9 = arith.constant dense<0.000000e+00> : vector<8x8xf32>
    %10 = tpu.matmul %3, %6, %cst_9 {dimension_numbers = #tpu.dot_dimension_numbers<[1], [0], [0], [1], [0, 0, 1, 1], [], []>} : vector<8x128xf32>, vector<128x8xf32>, vector<8x8xf32> -> vector<8x8xf32>
    %cst_10 = arith.constant 2.000000e+00 : f32
    %11 = vector.broadcast %cst_10 : f32 to vector<8x8xf32>
    %12 = arith.mulf %10, %11 : vector<8x8xf32>
    %cst_11 = arith.constant dense<0.000000e+00> : vector<8x8xf32>
    %13 = tpu.matmul %4, %6, %cst_11 {dimension_numbers = #tpu.dot_dimension_numbers<[1], [0], [0], [1], [0, 0, 1, 1], [], []>} : vector<8x128xf32>, vector<128x8xf32>, vector<8x8xf32> -> vector<8x8xf32>
    %cst_12 = arith.constant 2.000000e+00 : f32
    %14 = vector.broadcast %cst_12 : f32 to vector<8x8xf32>
    %15 = arith.mulf %13, %14 : vector<8x8xf32>
    %16 = math.exp %9 : vector<8x8xf32>
    %17 = math.exp %12 : vector<8x8xf32>
    %18 = math.exp %15 : vector<8x8xf32>
    %19 = arith.mulf %3, %3 : vector<8x128xf32>
    %cst_13 = arith.constant dense<0.000000e+00> : vector<8xf32>
    %20 = vector.multi_reduction <add>, %19, %cst_13 [1] : vector<8x128xf32> to vector<8xf32>
    %21 = vector.shape_cast %20 : vector<8xf32> to vector<8x1xf32>
    %cst_14 = arith.constant 2.000000e+00 : f32
    %22 = vector.broadcast %cst_14 : f32 to vector<8x1xf32>
    %23 = arith.mulf %21, %22 : vector<8x1xf32>
    %24 = math.exp %23 : vector<8x1xf32>
    %25 = arith.mulf %3, %4 : vector<8x128xf32>
    %cst_15 = arith.constant dense<0.000000e+00> : vector<8xf32>
    %26 = vector.multi_reduction <add>, %25, %cst_15 [1] : vector<8x128xf32> to vector<8xf32>
    %27 = vector.shape_cast %26 : vector<8xf32> to vector<8x1xf32>
    %cst_16 = arith.constant 2.000000e+00 : f32
    %28 = vector.broadcast %cst_16 : f32 to vector<8x1xf32>
    %29 = arith.mulf %27, %28 : vector<8x1xf32>
    %30 = arith.addf %16, %17 : vector<8x8xf32>
    %cst_17 = arith.constant dense<0.000000e+00> : vector<8xf32>
    %31 = vector.multi_reduction <add>, %30, %cst_17 [1] : vector<8x8xf32> to vector<8xf32>
    %32 = vector.shape_cast %31 : vector<8xf32> to vector<8x1xf32>
    %33 = arith.subf %32, %24 : vector<8x1xf32>
    %cst_18 = arith.constant 0.000000e+00 : f32
    %34 = vector.broadcast %cst_18 : f32 to vector<8x1xf32>
    %35 = arith.subf %33, %34 : vector<8x1xf32>
    %36 = math.log %35 : vector<8x1xf32>
    %cst_19 = arith.constant 2.000000e+00 : f32
    %37 = vector.broadcast %cst_19 : f32 to vector<8x1xf32>
    %38 = arith.mulf %37, %29 : vector<8x1xf32>
    %39 = arith.subf %36, %38 : vector<8x1xf32>
    %c0_20 = arith.constant 0 : index
    %c0_21 = arith.constant 0 : index
    %40 = vector.load %arg6[%c0_20, %c0_21] : memref<1x1xf32, #tpu.memory_space<vmem>>, vector<1x1xf32>
    %41 = vector.shape_cast %39 : vector<8x1xf32> to vector<1x8x1xf32>
    %cst_22 = arith.constant dense<0.000000e+00> : vector<1xf32>
    %42 = vector.multi_reduction <add>, %41, %cst_22 [1, 2] : vector<1x8x1xf32> to vector<1xf32>
    %43 = vector.shape_cast %42 : vector<1xf32> to vector<1x1x1xf32>
    %44 = vector.extract %43[0, 0, 0] : f32 from vector<1x1x1xf32>
    %45 = vector.broadcast %44 : f32 to vector<1x1xf32>
    %46 = arith.addf %40, %45 : vector<1x1xf32>
    %c0_23 = arith.constant 0 : index
    %c0_24 = arith.constant 0 : index
    %47 = vector.load %arg6[%c0_23, %c0_24] : memref<1x1xf32, #tpu.memory_space<vmem>>, vector<1x1xf32>
    tpu.vector_store %arg6[%c0_23, %c0_24], %46 {strides = array<i32>} : memref<1x1xf32, #tpu.memory_space<vmem>>, vector<1x1xf32>,
    %c0_25 = arith.constant 0 : index
    %c0_26 = arith.constant 0 : index
    %48 = vector.load %arg7[%c0_25, %c0_26] : memref<1x8xf32, #tpu.memory_space<vmem>>, vector<1x8xf32>
    %49 = arith.addf %17, %18 : vector<8x8xf32>
    %cst_27 = arith.constant dense<0.000000e+00> : vector<8xf32>
    %50 = vector.multi_reduction <add>, %49, %cst_27 [0] : vector<8x8xf32> to vector<8xf32>
    %51 = vector.shape_cast %50 : vector<8xf32> to vector<1x8xf32>
    %52 = arith.addf %48, %51 : vector<1x8xf32>
    %c0_28 = arith.constant 0 : index
    %c0_29 = arith.constant 0 : index
    %53 = vector.load %arg7[%c0_28, %c0_29] : memref<1x8xf32, #tpu.memory_space<vmem>>, vector<1x8xf32>
    tpu.vector_store %arg7[%c0_28, %c0_29], %52 {strides = array<i32>} : memref<1x8xf32, #tpu.memory_space<vmem>>, vector<1x8xf32>,
    %c0_i32_30 = arith.constant 0 : i32
    %54 = arith.cmpi eq, %arg0, %c0_i32_30 : i32
    %55 = arith.extui %54 : i1 to i32
    %c0_i32_31 = arith.constant 0 : i32
    %56 = arith.cmpi ne, %55, %c0_i32_31 : i32
    scf.if %56 {
      %c0_32 = arith.constant 0 : index
      %c0_33 = arith.constant 0 : index
      %57 = vector.load %arg4[%c0_32, %c0_33] : memref<128x8xf32, #tpu.memory_space<vmem>>, vector<128x8xf32>
      %58 = arith.mulf %57, %57 : vector<128x8xf32>
      %cst_34 = arith.constant dense<0.000000e+00> : vector<8xf32>
      %59 = vector.multi_reduction <add>, %58, %cst_34 [0] : vector<128x8xf32> to vector<8xf32>
      %60 = vector.shape_cast %59 : vector<8xf32> to vector<1x8xf32>
      %cst_35 = arith.constant 2.000000e+00 : f32
      %61 = vector.broadcast %cst_35 : f32 to vector<1x8xf32>
      %62 = arith.mulf %60, %61 : vector<1x8xf32>
      %63 = math.exp %62 : vector<1x8xf32>
      %c0_36 = arith.constant 0 : index
      %c0_37 = arith.constant 0 : index
      %64 = vector.load %arg7[%c0_36, %c0_37] : memref<1x8xf32, #tpu.memory_space<vmem>>, vector<1x8xf32>
      %65 = arith.subf %64, %63 : vector<1x8xf32>
      %cst_38 = arith.constant 0.000000e+00 : f32
      %66 = vector.broadcast %cst_38 : f32 to vector<1x8xf32>
      %67 = arith.subf %65, %66 : vector<1x8xf32>
      %68 = math.log %67 : vector<1x8xf32>
      %c0_39 = arith.constant 0 : index
      %c0_40 = arith.constant 0 : index
      %69 = vector.load %arg6[%c0_39, %c0_40] : memref<1x1xf32, #tpu.memory_space<vmem>>, vector<1x1xf32>
      %70 = vector.shape_cast %68 : vector<1x8xf32> to vector<1x1x8xf32>
      %cst_41 = arith.constant dense<0.000000e+00> : vector<1xf32>
      %71 = vector.multi_reduction <add>, %70, %cst_41 [1, 2] : vector<1x1x8xf32> to vector<1xf32>
      %72 = vector.shape_cast %71 : vector<1xf32> to vector<1x1x1xf32>
      %73 = vector.extract %72[0, 0, 0] : f32 from vector<1x1x1xf32>
      %74 = vector.broadcast %73 : f32 to vector<1x1xf32>
      %75 = arith.addf %69, %74 : vector<1x1xf32>
      %cst_42 = arith.constant 6.250000e-02 : f32
      %76 = vector.broadcast %cst_42 : f32 to vector<1x1xf32>
      %77 = arith.mulf %75, %76 : vector<1x1xf32>
      %c0_43 = arith.constant 0 : index
      %c0_44 = arith.constant 0 : index
      %78 = vector.load %arg5[%c0_43, %c0_44] : memref<1x1xf32, #tpu.memory_space<vmem>>, vector<1x1xf32>
      tpu.vector_store %arg5[%c0_43, %c0_44], %77 {strides = array<i32>} : memref<1x1xf32, #tpu.memory_space<vmem>>, vector<1x1xf32>,
    } else {
    }
    return
  }
  func.func @transform_0(%arg0: i32) -> (i32, i32) {
    %c0_i32 = arith.constant 0 : i32
    %c0_i32_0 = arith.constant 0 : i32
    return %arg0, %c0_i32 : i32, i32
  }
  func.func @transform_1(%arg0: i32) -> (i32, i32) {
    %c0_i32 = arith.constant 0 : i32
    %c0_i32_0 = arith.constant 0 : i32
    return %arg0, %c0_i32 : i32, i32
  }
  func.func @transform_2(%arg0: i32) -> (i32, i32) {
    %c0_i32 = arith.constant 0 : i32
    %c0_i32_0 = arith.constant 0 : i32
    %c0_i32_1 = arith.constant 0 : i32
    return %c0_i32, %c0_i32_0 : i32, i32
  }
  func.func @transform_3(%arg0: i32) -> (i32, i32) {
    %c0_i32 = arith.constant 0 : i32
    %c0_i32_0 = arith.constant 0 : i32
    %c0_i32_1 = arith.constant 0 : i32
    return %c0_i32, %c0_i32_0 : i32, i32
  }
  func.func @transform_4(%arg0: i32) -> (i32, i32) {
    %c0_i32 = arith.constant 0 : i32
    %c0_i32_0 = arith.constant 0 : i32
    %c0_i32_1 = arith.constant 0 : i32
    return %c0_i32, %c0_i32_0 : i32, i32
  }
}

module attributes {stable_mosaic.version = 11 : i64} {
  func.func @kernel(%arg0: i32, %arg1: memref<8x128xf32, #tpu.memory_space<vmem>>, %arg2: memref<8x128xf32, #tpu.memory_space<vmem>>, %arg3: memref<128x8xf32, #tpu.memory_space<vmem>>, %arg4: memref<128x8xf32, #tpu.memory_space<vmem>>, %arg5: memref<1x1xf32, #tpu.memory_space<vmem>>, %arg6: memref<1x1xf32, #tpu.memory_space<vmem>>, %arg7: memref<1x8xf32, #tpu.memory_space<vmem>>) attributes {dimension_semantics = [#tpu.dimension_semantics<arbitrary>], iteration_bounds = array<i64: 1>, scalar_prefetch = 0 : i64, scratch_operands = 2 : i64, tpu.core_type = #tpu.core_type<tc>, window_params = [{transform_indices = @transform_0, window_bounds = array<i64: 8, 128>}, {transform_indices = @transform_1, window_bounds = array<i64: 8, 128>}, {pipeline_mode = #tpu.pipeline_mode<synchronous>, transform_indices = @transform_2, window_bounds = array<i64: 128, 8>}, {pipeline_mode = #tpu.pipeline_mode<synchronous>, transform_indices = @transform_3, window_bounds = array<i64: 128, 8>}, {pipeline_mode = #tpu.pipeline_mode<synchronous>, transform_indices = @transform_4, window_bounds = array<i64: 1, 1>}]} {
    %c0_i32 = arith.constant 0 : i32
    %0 = arith.cmpi eq, %arg0, %c0_i32 : i32
    %1 = arith.extui %0 : i1 to i32
    %c0_i32_0 = arith.constant 0 : i32
    %2 = arith.cmpi ne, %1, %c0_i32_0 : i32
    scf.if %2 {
      %cst_32 = arith.constant 0.000000e+00 : f32
      %57 = vector.broadcast %cst_32 : f32 to vector<1x1xf32>
      %c0_33 = arith.constant 0 : index
      %c0_34 = arith.constant 0 : index
      %58 = vector.load %arg6[%c0_33, %c0_34] : memref<1x1xf32, #tpu.memory_space<vmem>>, vector<1x1xf32>
      tpu.vector_store %arg6[%c0_33, %c0_34], %57 {strides = array<i32>} : memref<1x1xf32, #tpu.memory_space<vmem>>, vector<1x1xf32>,
      %cst_35 = arith.constant 0.000000e+00 : f32
      %59 = vector.broadcast %cst_35 : f32 to vector<1x8xf32>
      %c0_36 = arith.constant 0 : index
      %c0_37 = arith.constant 0 : index
      %60 = vector.load %arg7[%c0_36, %c0_37] : memref<1x8xf32, #tpu.memory_space<vmem>>, vector<1x8xf32>
      tpu.vector_store %arg7[%c0_36, %c0_37], %59 {strides = array<i32>} : memref<1x8xf32, #tpu.memory_space<vmem>>, vector<1x8xf32>,
    } else {
    }
    %c0 = arith.constant 0 : index
    %c0_1 = arith.constant 0 : index
    %3 = vector.load %arg1[%c0, %c0_1] : memref<8x128xf32, #tpu.memory_space<vmem>>, vector<8x128xf32>
    %c0_2 = arith.constant 0 : index
    %c0_3 = arith.constant 0 : index
    %4 = vector.load %arg2[%c0_2, %c0_3] : memref<8x128xf32, #tpu.memory_space<vmem>>, vector<8x128xf32>
    %c0_4 = arith.constant 0 : index
    %c0_5 = arith.constant 0 : index
    %5 = vector.load %arg3[%c0_4, %c0_5] : memref<128x8xf32, #tpu.memory_space<vmem>>, vector<128x8xf32>
    %c0_6 = arith.constant 0 : index
    %c0_7 = arith.constant 0 : index
    %6 = vector.load %arg4[%c0_6, %c0_7] : memref<128x8xf32, #tpu.memory_space<vmem>>, vector<128x8xf32>
    %cst = arith.constant dense<0.000000e+00> : vector<8x8xf32>
    %7 = tpu.matmul %3, %5, %cst {dimension_numbers = #tpu.dot_dimension_numbers<[1], [0], [0], [1], [0, 0, 1, 1], [], []>} : vector<8x128xf32>, vector<128x8xf32>, vector<8x8xf32> -> vector<8x8xf32>
    %cst_8 = arith.constant 2.000000e+00 : f32
    %8 = vector.broadcast %cst_8 : f32 to vector<8x8xf32>
    %9 = arith.mulf %7, %8 : vector<8x8xf32>
    %cst_9 = arith.constant dense<0.000000e+00> : vector<8x8xf32>
    %10 = tpu.matmul %3, %6, %cst_9 {dimension_numbers = #tpu.dot_dimension_numbers<[1], [0], [0], [1], [0, 0, 1, 1], [], []>} : vector<8x128xf32>, vector<128x8xf32>, vector<8x8xf32> -> vector<8x8xf32>
    %cst_10 = arith.constant 2.000000e+00 : f32
    %11 = vector.broadcast %cst_10 : f32 to vector<8x8xf32>
    %12 = arith.mulf %10, %11 : vector<8x8xf32>
    %cst_11 = arith.constant dense<0.000000e+00> : vector<8x8xf32>
    %13 = tpu.matmul %4, %6, %cst_11 {dimension_numbers = #tpu.dot_dimension_numbers<[1], [0], [0], [1], [0, 0, 1, 1], [], []>} : vector<8x128xf32>, vector<128x8xf32>, vector<8x8xf32> -> vector<8x8xf32>
    %cst_12 = arith.constant 2.000000e+00 : f32
    %14 = vector.broadcast %cst_12 : f32 to vector<8x8xf32>
    %15 = arith.mulf %13, %14 : vector<8x8xf32>
    %16 = math.exp %9 : vector<8x8xf32>
    %17 = math.exp %12 : vector<8x8xf32>
    %18 = math.exp %15 : vector<8x8xf32>
    %19 = arith.mulf %3, %3 : vector<8x128xf32>
    %cst_13 = arith.constant dense<0.000000e+00> : vector<8xf32>
    %20 = vector.multi_reduction <add>, %19, %cst_13 [1] : vector<8x128xf32> to vector<8xf32>
    %21 = vector.shape_cast %20 : vector<8xf32> to vector<8x1xf32>
    %cst_14 = arith.constant 2.000000e+00 : f32
    %22 = vector.broadcast %cst_14 : f32 to vector<8x1xf32>
    %23 = arith.mulf %21, %22 : vector<8x1xf32>
    %24 = math.exp %23 : vector<8x1xf32>
    %25 = arith.mulf %3, %4 : vector<8x128xf32>
    %cst_15 = arith.constant dense<0.000000e+00> : vector<8xf32>
    %26 = vector.multi_reduction <add>, %25, %cst_15 [1] : vector<8x128xf32> to vector<8xf32>
    %27 = vector.shape_cast %26 : vector<8xf32> to vector<8x1xf32>
    %cst_16 = arith.constant 2.000000e+00 : f32
    %28 = vector.broadcast %cst_16 : f32 to vector<8x1xf32>
    %29 = arith.mulf %27, %28 : vector<8x1xf32>
    %30 = arith.addf %16, %17 : vector<8x8xf32>
    %cst_17 = arith.constant dense<0.000000e+00> : vector<8xf32>
    %31 = vector.multi_reduction <add>, %30, %cst_17 [1] : vector<8x8xf32> to vector<8xf32>
    %32 = vector.shape_cast %31 : vector<8xf32> to vector<8x1xf32>
    %33 = arith.subf %32, %24 : vector<8x1xf32>
    %cst_18 = arith.constant 0.000000e+00 : f32
    %34 = vector.broadcast %cst_18 : f32 to vector<8x1xf32>
    %35 = arith.subf %33, %34 : vector<8x1xf32>
    %36 = math.log %35 : vector<8x1xf32>
    %cst_19 = arith.constant 2.000000e+00 : f32
    %37 = vector.broadcast %cst_19 : f32 to vector<8x1xf32>
    %38 = arith.mulf %37, %29 : vector<8x1xf32>
    %39 = arith.subf %36, %38 : vector<8x1xf32>
    %c0_20 = arith.constant 0 : index
    %c0_21 = arith.constant 0 : index
    %40 = vector.load %arg6[%c0_20, %c0_21] : memref<1x1xf32, #tpu.memory_space<vmem>>, vector<1x1xf32>
    %41 = vector.shape_cast %39 : vector<8x1xf32> to vector<1x8x1xf32>
    %cst_22 = arith.constant dense<0.000000e+00> : vector<1xf32>
    %42 = vector.multi_reduction <add>, %41, %cst_22 [1, 2] : vector<1x8x1xf32> to vector<1xf32>
    %43 = vector.shape_cast %42 : vector<1xf32> to vector<1x1x1xf32>
    %44 = vector.extract %43[0, 0, 0] : f32 from vector<1x1x1xf32>
    %45 = vector.broadcast %44 : f32 to vector<1x1xf32>
    %46 = arith.addf %40, %45 : vector<1x1xf32>
    %c0_23 = arith.constant 0 : index
    %c0_24 = arith.constant 0 : index
    %47 = vector.load %arg6[%c0_23, %c0_24] : memref<1x1xf32, #tpu.memory_space<vmem>>, vector<1x1xf32>
    tpu.vector_store %arg6[%c0_23, %c0_24], %46 {strides = array<i32>} : memref<1x1xf32, #tpu.memory_space<vmem>>, vector<1x1xf32>,
    %c0_25 = arith.constant 0 : index
    %c0_26 = arith.constant 0 : index
    %48 = vector.load %arg7[%c0_25, %c0_26] : memref<1x8xf32, #tpu.memory_space<vmem>>, vector<1x8xf32>
    %49 = arith.addf %17, %18 : vector<8x8xf32>
    %cst_27 = arith.constant dense<0.000000e+00> : vector<8xf32>
    %50 = vector.multi_reduction <add>, %49, %cst_27 [0] : vector<8x8xf32> to vector<8xf32>
    %51 = vector.shape_cast %50 : vector<8xf32> to vector<1x8xf32>
    %52 = arith.addf %48, %51 : vector<1x8xf32>
    %c0_28 = arith.constant 0 : index
    %c0_29 = arith.constant 0 : index
    %53 = vector.load %arg7[%c0_28, %c0_29] : memref<1x8xf32, #tpu.memory_space<vmem>>, vector<1x8xf32>
    tpu.vector_store %arg7[%c0_28, %c0_29], %52 {strides = array<i32>} : memref<1x8xf32, #tpu.memory_space<vmem>>, vector<1x8xf32>,
    %c0_i32_30 = arith.constant 0 : i32
    %54 = arith.cmpi eq, %arg0, %c0_i32_30 : i32
    %55 = arith.extui %54 : i1 to i32
    %c0_i32_31 = arith.constant 0 : i32
    %56 = arith.cmpi ne, %55, %c0_i32_31 : i32
    scf.if %56 {
      %c0_32 = arith.constant 0 : index
      %c0_33 = arith.constant 0 : index
      %57 = vector.load %arg4[%c0_32, %c0_33] : memref<128x8xf32, #tpu.memory_space<vmem>>, vector<128x8xf32>
      %58 = arith.mulf %57, %57 : vector<128x8xf32>
      %cst_34 = arith.constant dense<0.000000e+00> : vector<8xf32>
      %59 = vector.multi_reduction <add>, %58, %cst_34 [0] : vector<128x8xf32> to vector<8xf32>
      %60 = vector.shape_cast %59 : vector<8xf32> to vector<1x8xf32>
      %cst_35 = arith.constant 2.000000e+00 : f32
      %61 = vector.broadcast %cst_35 : f32 to vector<1x8xf32>
      %62 = arith.mulf %60, %61 : vector<1x8xf32>
      %63 = math.exp %62 : vector<1x8xf32>
      %c0_36 = arith.constant 0 : index
      %c0_37 = arith.constant 0 : index
      %64 = vector.load %arg7[%c0_36, %c0_37] : memref<1x8xf32, #tpu.memory_space<vmem>>, vector<1x8xf32>
      %65 = arith.subf %64, %63 : vector<1x8xf32>
      %cst_38 = arith.constant 0.000000e+00 : f32
      %66 = vector.broadcast %cst_38 : f32 to vector<1x8xf32>
      %67 = arith.subf %65, %66 : vector<1x8xf32>
      %68 = math.log %67 : vector<1x8xf32>
      %c0_39 = arith.constant 0 : index
      %c0_40 = arith.constant 0 : index
      %69 = vector.load %arg6[%c0_39, %c0_40] : memref<1x1xf32, #tpu.memory_space<vmem>>, vector<1x1xf32>
      %70 = vector.shape_cast %68 : vector<1x8xf32> to vector<1x1x8xf32>
      %cst_41 = arith.constant dense<0.000000e+00> : vector<1xf32>
      %71 = vector.multi_reduction <add>, %70, %cst_41 [1, 2] : vector<1x1x8xf32> to vector<1xf32>
      %72 = vector.shape_cast %71 : vector<1xf32> to vector<1x1x1xf32>
      %73 = vector.extract %72[0, 0, 0] : f32 from vector<1x1x1xf32>
      %74 = vector.broadcast %73 : f32 to vector<1x1xf32>
      %75 = arith.addf %69, %74 : vector<1x1xf32>
      %cst_42 = arith.constant 6.250000e-02 : f32
      %76 = vector.broadcast %cst_42 : f32 to vector<1x1xf32>
      %77 = arith.mulf %75, %76 : vector<1x1xf32>
      %c0_43 = arith.constant 0 : index
      %c0_44 = arith.constant 0 : index
      %78 = vector.load %arg5[%c0_43, %c0_44] : memref<1x1xf32, #tpu.memory_space<vmem>>, vector<1x1xf32>
      tpu.vector_store %arg5[%c0_43, %c0_44], %77 {strides = array<i32>} : memref<1x1xf32, #tpu.memory_space<vmem>>, vector<1x1xf32>,
    } else {
    }
    return
  }
  func.func @transform_0(%arg0: i32) -> (i32, i32) {
    %c0_i32 = arith.constant 0 : i32
    %c0_i32_0 = arith.constant 0 : i32
    return %arg0, %c0_i32 : i32, i32
  }
  func.func @transform_1(%arg0: i32) -> (i32, i32) {
    %c0_i32 = arith.constant 0 : i32
    %c0_i32_0 = arith.constant 0 : i32
    return %arg0, %c0_i32 : i32, i32
  }
  func.func @transform_2(%arg0: i32) -> (i32, i32) {
    %c0_i32 = arith.constant 0 : i32
    %c0_i32_0 = arith.constant 0 : i32
    %c0_i32_1 = arith.constant 0 : i32
    return %c0_i32, %c0_i32_0 : i32, i32
  }
  func.func @transform_3(%arg0: i32) -> (i32, i32) {
    %c0_i32 = arith.constant 0 : i32
    %c0_i32_0 = arith.constant 0 : i32
    %c0_i32_1 = arith.constant 0 : i32
    return %c0_i32, %c0_i32_0 : i32, i32
  }
  func.func @transform_4(%arg0: i32) -> (i32, i32) {
    %c0_i32 = arith.constant 0 : i32
    %c0_i32_0 = arith.constant 0 : i32
    %c0_i32_1 = arith.constant 0 : i32
    return %c0_i32, %c0_i32_0 : i32, i32
  }
}

</mosaic_0001>

<llo_original>
// kernel: tpu_custom_call.1
$region0: #{tpu_custom_call.1}
  #allocation0 [shape = 'u32[]', space=smem, size = 0x4, offset = 0x4, fixed_abs, tag = 'smem constant byte address 0x4 - core index']
  #allocation1 [shape = 'u32[144,128]{1,0:T(1,128)}', space=vmem, size = 0x12000, scoped, tag = 'internal scratch']
  #allocation2 [shape = 'f32[1,1]{1,0:T(1,128)}', space=vmem, size = 0x200, scoped, tag = 'scratch operand']
  #allocation3 [shape = 'f32[1,8]{1,0:T(1,128)}', space=vmem, size = 0x200, scoped, tag = 'scratch operand']
  %s0 = inlined_call_operand.vmem [shape: f32[8,128], index: 0, kind: input, shape index: {}]
  %s1 = inlined_call_operand.vmem [shape: f32[8,128], index: 1, kind: input, shape index: {}]
  %s2 = inlined_call_operand.vmem [shape: f32[128,8], index: 2, kind: input, shape index: {}]
  %s3 = inlined_call_operand.vmem [shape: f32[128,8], index: 3, kind: input, shape index: {}]
  %s4 = inlined_call_operand.hbm [shape: f32[1,1], index: 4, kind: output, shape index: {}]
  %s5 = sld [smem:[#allocation0]]
  $region34: #{tpu_custom_call.1} parent=0
    _
  %s7 = ssub.s32 1, %s5
  %s8 = scalar_select 0, %s7, %s5
  $region1: #{tpu_custom_call.1} parent=0
    #allocation4 [shape = 'u8[512]{0}', space=vmem, size = 0x400, scoped, tag = 'output window, operand 0, single buffered']
    #allocation5 [shape = 's32[1]{0}', space=sflag, size = 0x4, scoped, tag = 'scoped memory for tpu_custom_call.1']
    %9 = vsyncpa [#allocation5], 0
    // Predicated region
    $region2: #{tpu_custom_call.1} parent=1 // pred_check
      _
    $region3: #{tpu_custom_call.1} parent=1 // pred_check_branch
      %11 = sbr.rel (0) target = $region5
    $region4: #{tpu_custom_call.1} parent=1 // pred_region
      _
    $region5: #{tpu_custom_call.1} parent=1 // pred_fallthru
      _
    // Predicated region
    $region6: #{tpu_custom_call.1} parent=1 // pred_check
      _
    $region7: #{tpu_custom_call.1} parent=1 // pred_check_branch
      %13 = sbr.rel (0) target = $region9
    $region8: #{tpu_custom_call.1} parent=1 // pred_region
      _
    $region9: #{tpu_custom_call.1} parent=1 // pred_fallthru
      _
    // Predicated region
    $region10: #{tpu_custom_call.1} parent=1 // pred_check
      _
    $region11: #{tpu_custom_call.1} parent=1 // pred_check_branch
      %15 = sbr.rel (0) target = $region13
    $region12: #{tpu_custom_call.1} parent=1 // pred_region
      _
    $region13: #{tpu_custom_call.1} parent=1 // pred_fallthru
      _
    // Predicated region
    $region14: #{tpu_custom_call.1} parent=1 // pred_check
      _
    $region15: #{tpu_custom_call.1} parent=1 // pred_check_branch
      %17 = sbr.rel (0) target = $region17
    $region16: #{tpu_custom_call.1} parent=1 // pred_region
      _
    $region17: #{tpu_custom_call.1} parent=1 // pred_fallthru
      _
    %p18 = scmp.eq.s32.totalorder 0, 0
    // Predicated region
    $region18: #{tpu_custom_call.1} parent=1 // pred_check
      %p19 = pneg %p18
    $region19: #{tpu_custom_call.1} parent=1 // pred_check_branch
      %21 = sbr.rel (%p19) target = $region21
    $region20: #{tpu_custom_call.1} parent=1 // pred_region
      %vm22 = vcmask 0
      %23 = vst.msk [vmem:[#allocation2] sm:$0x1] %vm22, 0.0
      %vm24 = vcmask 57344
      %25 = vst.msk [vmem:[#allocation3] sm:$0x1] %vm24, 0.0
    $region21: #{tpu_custom_call.1} parent=1 // pred_fallthru
      _
    %v26 = vld [vmem:[%s0] sm:$0xff]
    %v27 = vld [vmem:[%s1] sm:$0xff]
    %v28 = vld [vmem:[%s2] sm:$0xff]
    %v29 = vld [vmem:[%s2 + $0x8] sm:$0xff]
    %v30 = vld [vmem:[%s2 + $0x10] sm:$0xff]
    %v31 = vld [vmem:[%s2 + $0x18] sm:$0xff]
    %v32 = vld [vmem:[%s2 + $0x20] sm:$0xff]
    %v33 = vld [vmem:[%s2 + $0x28] sm:$0xff]
    %v34 = vld [vmem:[%s2 + $0x30] sm:$0xff]
    %v35 = vld [vmem:[%s2 + $0x38] sm:$0xff]
    %v36 = vld [vmem:[%s2 + $0x40] sm:$0xff]
    %v37 = vld [vmem:[%s2 + $0x48] sm:$0xff]
    %v38 = vld [vmem:[%s2 + $0x50] sm:$0xff]
    %v39 = vld [vmem:[%s2 + $0x58] sm:$0xff]
    %v40 = vld [vmem:[%s2 + $0x60] sm:$0xff]
    %v41 = vld [vmem:[%s2 + $0x68] sm:$0xff]
    %v42 = vld [vmem:[%s2 + $0x70] sm:$0xff]
    %v43 = vld [vmem:[%s2 + $0x78] sm:$0xff]
    %v44 = vld [vmem:[%s3] sm:$0xff]
    %v45 = vld [vmem:[%s3 + $0x8] sm:$0xff]
    %v46 = vld [vmem:[%s3 + $0x10] sm:$0xff]
    %v47 = vld [vmem:[%s3 + $0x18] sm:$0xff]
    %v48 = vld [vmem:[%s3 + $0x20] sm:$0xff]
    %v49 = vld [vmem:[%s3 + $0x28] sm:$0xff]
    %v50 = vld [vmem:[%s3 + $0x30] sm:$0xff]
    %v51 = vld [vmem:[%s3 + $0x38] sm:$0xff]
    %v52 = vld [vmem:[%s3 + $0x40] sm:$0xff]
    %v53 = vld [vmem:[%s3 + $0x48] sm:$0xff]
    %v54 = vld [vmem:[%s3 + $0x50] sm:$0xff]
    %v55 = vld [vmem:[%s3 + $0x58] sm:$0xff]
    %v56 = vld [vmem:[%s3 + $0x60] sm:$0xff]
    %v57 = vld [vmem:[%s3 + $0x68] sm:$0xff]
    %v58 = vld [vmem:[%s3 + $0x70] sm:$0xff]
    %v59 = vld [vmem:[%s3 + $0x78] sm:$0xff]
    %60 = vmatprep.subr.mxu0 0.0
    %61 = vmatpush1.msra.mxu0 %v43
    %62 = vmatprep.subr.mxu0 0.0
    %63 = vmatpush1.msra.mxu0 %v42
    %64 = vmatprep.subr.mxu0 0.0
    %65 = vmatpush1.msra.mxu0 %v41
    %66 = vmatprep.subr.mxu0 0.0
    %67 = vmatpush1.msra.mxu0 %v40
    %68 = vmatprep.subr.mxu0 0.0
    %69 = vmatpush1.msra.mxu0 %v39
    %70 = vmatprep.subr.mxu0 0.0
    %71 = vmatpush1.msra.mxu0 %v38
    %72 = vmatprep.subr.mxu0 0.0
    %73 = vmatpush1.msra.mxu0 %v37
    %74 = vmatprep.subr.mxu0 0.0
    %75 = vmatpush1.msra.mxu0 %v36
    %76 = vmatprep.subr.mxu0 0.0
    %77 = vmatpush1.msra.mxu0 %v35
    %78 = vmatprep.subr.mxu0 0.0
    %79 = vmatpush1.msra.mxu0 %v34
    %80 = vmatprep.subr.mxu0 0.0
    %81 = vmatpush1.msra.mxu0 %v33
    %82 = vmatprep.subr.mxu0 0.0
    %83 = vmatpush1.msra.mxu0 %v32
    %84 = vmatprep.subr.mxu0 0.0
    %85 = vmatpush1.msra.mxu0 %v31
    %86 = vmatprep.subr.mxu0 0.0
    %87 = vmatpush1.msra.mxu0 %v30
    %88 = vmatprep.subr.mxu0 0.0
    %89 = vmatpush1.msra.mxu0 %v29
    %90 = vmatprep.subr.mxu0 0.0
    %91 = vmatpush1.msra.mxu0 %v28
    %92 = vmatprep.subr.mxu0 0.0
    %93 = vmatpush2.msra.mxu0 0.0
    %94 = vmatprep.subr.mxu0 0.0
    %95 = vmatpush2.msra.mxu0 0.0
    %96 = vmatprep.subr.mxu0 0.0
    %97 = vmatpush2.msra.mxu0 0.0
    %98 = vmatprep.subr.mxu0 0.0
    %99 = vmatpush2.msra.mxu0 0.0
    %100 = vmatprep.subr.mxu0 0.0
    %101 = vmatpush2.msra.mxu0 0.0
    %102 = vmatprep.subr.mxu0 0.0
    %103 = vmatpush2.msra.mxu0 0.0
    %104 = vmatprep.subr.mxu0 0.0
    %105 = vmatpush2.msra.mxu0 0.0
    %106 = vmatprep.subr.mxu0 0.0
    %107 = vmatpush2.msra.mxu0 0.0
    %108 = vmatprep.subr.mxu0 0.0
    %109 = vmatpush2.msra.mxu0 0.0
    %110 = vmatprep.subr.mxu0 0.0
    %111 = vmatpush2.msra.mxu0 0.0
    %112 = vmatprep.subr.mxu0 0.0
    %113 = vmatpush2.msra.mxu0 0.0
    %114 = vmatprep.subr.mxu0 0.0
    %115 = vmatpush2.msra.mxu0 0.0
    %116 = vmatprep.subr.mxu0 0.0
    %117 = vmatpush2.msra.mxu0 0.0
    %118 = vmatprep.subr.mxu0 0.0
    %119 = vmatpush2.msra.mxu0 0.0
    %120 = vmatprep.subr.mxu0 0.0
    %121 = vmatpush2.msra.mxu0 0.0
    %122 = vmatprep.subr.mxu0 0.0
    %123 = vmatpush2.msra.mxu0 0.0
    %124 = vmatprep.mubr.f32.mxu0 0.0
    %125 = vmatmul.mubr.f32.gmra.mxu0 %v26
    %v126 = vpop.f32.mrf.mxu0
    %v127 = vadd.f32 0.0, %v126
    %v128 = vpop.f32.mrf.mxu0
    %129 = vdwg.mxu0
    %v130 = vmul.f32 %v127, 2.0
    %131 = vmatprep.subr.mxu0 0.0
    %132 = vmatpush1.msra.mxu0 %v59
    %133 = vmatprep.subr.mxu0 0.0
    %134 = vmatpush1.msra.mxu0 %v58
    %135 = vmatprep.subr.mxu0 0.0
    %136 = vmatpush1.msra.mxu0 %v57
    %137 = vmatprep.subr.mxu0 0.0
    %138 = vmatpush1.msra.mxu0 %v56
    %139 = vmatprep.subr.mxu0 0.0
    %140 = vmatpush1.msra.mxu0 %v55
    %141 = vmatprep.subr.mxu0 0.0
    %142 = vmatpush1.msra.mxu0 %v54
    %143 = vmatprep.subr.mxu0 0.0
    %144 = vmatpush1.msra.mxu0 %v53
    %145 = vmatprep.subr.mxu0 0.0
    %146 = vmatpush1.msra.mxu0 %v52
    %147 = vmatprep.subr.mxu0 0.0
    %148 = vmatpush1.msra.mxu0 %v51
    %149 = vmatprep.subr.mxu0 0.0
    %150 = vmatpush1.msra.mxu0 %v50
    %151 = vmatprep.subr.mxu0 0.0
    %152 = vmatpush1.msra.mxu0 %v49
    %153 = vmatprep.subr.mxu0 0.0
    %154 = vmatpush1.msra.mxu0 %v48
    %155 = vmatprep.subr.mxu0 0.0
    %156 = vmatpush1.msra.mxu0 %v47
    %157 = vmatprep.subr.mxu0 0.0
    %158 = vmatpush1.msra.mxu0 %v46
    %159 = vmatprep.subr.mxu0 0.0
    %160 = vmatpush1.msra.mxu0 %v45
    %161 = vmatprep.subr.mxu0 0.0
    %162 = vmatpush1.msra.mxu0 %v44
    %163 = vmatprep.subr.mxu0 0.0
    %164 = vmatpush2.msra.mxu0 0.0
    %165 = vmatprep.subr.mxu0 0.0
    %166 = vmatpush2.msra.mxu0 0.0
    %167 = vmatprep.subr.mxu0 0.0
    %168 = vmatpush2.msra.mxu0 0.0
    %169 = vmatprep.subr.mxu0 0.0
    %170 = vmatpush2.msra.mxu0 0.0
    %171 = vmatprep.subr.mxu0 0.0
    %172 = vmatpush2.msra.mxu0 0.0
    %173 = vmatprep.subr.mxu0 0.0
    %174 = vmatpush2.msra.mxu0 0.0
    %175 = vmatprep.subr.mxu0 0.0
    %176 = vmatpush2.msra.mxu0 0.0
    %177 = vmatprep.subr.mxu0 0.0
    %178 = vmatpush2.msra.mxu0 0.0
    %179 = vmatprep.subr.mxu0 0.0
    %180 = vmatpush2.msra.mxu0 0.0
    %181 = vmatprep.subr.mxu0 0.0
    %182 = vmatpush2.msra.mxu0 0.0
    %183 = vmatprep.subr.mxu0 0.0
    %184 = vmatpush2.msra.mxu0 0.0
    %185 = vmatprep.subr.mxu0 0.0
    %186 = vmatpush2.msra.mxu0 0.0
    %187 = vmatprep.subr.mxu0 0.0
    %188 = vmatpush2.msra.mxu0 0.0
    %189 = vmatprep.subr.mxu0 0.0
    %190 = vmatpush2.msra.mxu0 0.0
    %191 = vmatprep.subr.mxu0 0.0
    %192 = vmatpush2.msra.mxu0 0.0
    %193 = vmatprep.subr.mxu0 0.0
    %194 = vmatpush2.msra.mxu0 0.0
    %195 = vmatprep.mubr.f32.mxu0 0.0
    %196 = vmatmul.mubr.f32.gmra.mxu0 %v26
    %v197 = vpop.f32.mrf.mxu0
    %v198 = vadd.f32 0.0, %v197
    %v199 = vpop.f32.mrf.mxu0
    %200 = vdwg.mxu0
    %v201 = vmul.f32 %v198, 2.0
    %202 = vmatprep.subr.mxu0 0.0
    %203 = vmatpush1.msra.mxu0 %v59
    %204 = vmatprep.subr.mxu0 0.0
    %205 = vmatpush1.msra.mxu0 %v58
    %206 = vmatprep.subr.mxu0 0.0
    %207 = vmatpush1.msra.mxu0 %v57
    %208 = vmatprep.subr.mxu0 0.0
    %209 = vmatpush1.msra.mxu0 %v56
    %210 = vmatprep.subr.mxu0 0.0
    %211 = vmatpush1.msra.mxu0 %v55
    %212 = vmatprep.subr.mxu0 0.0
    %213 = vmatpush1.msra.mxu0 %v54
    %214 = vmatprep.subr.mxu0 0.0
    %215 = vmatpush1.msra.mxu0 %v53
    %216 = vmatprep.subr.mxu0 0.0
    %217 = vmatpush1.msra.mxu0 %v52
    %218 = vmatprep.subr.mxu0 0.0
    %219 = vmatpush1.msra.mxu0 %v51
    %220 = vmatprep.subr.mxu0 0.0
    %221 = vmatpush1.msra.mxu0 %v50
    %222 = vmatprep.subr.mxu0 0.0
    %223 = vmatpush1.msra.mxu0 %v49
    %224 = vmatprep.subr.mxu0 0.0
    %225 = vmatpush1.msra.mxu0 %v48
    %226 = vmatprep.subr.mxu0 0.0
    %227 = vmatpush1.msra.mxu0 %v47
    %228 = vmatprep.subr.mxu0 0.0
    %229 = vmatpush1.msra.mxu0 %v46
    %230 = vmatprep.subr.mxu0 0.0
    %231 = vmatpush1.msra.mxu0 %v45
    %232 = vmatprep.subr.mxu0 0.0
    %233 = vmatpush1.msra.mxu0 %v44
    %234 = vmatprep.subr.mxu0 0.0
    %235 = vmatpush2.msra.mxu0 0.0
    %236 = vmatprep.subr.mxu0 0.0
    %237 = vmatpush2.msra.mxu0 0.0
    %238 = vmatprep.subr.mxu0 0.0
    %239 = vmatpush2.msra.mxu0 0.0
    %240 = vmatprep.subr.mxu0 0.0
    %241 = vmatpush2.msra.mxu0 0.0
    %242 = vmatprep.subr.mxu0 0.0
    %243 = vmatpush2.msra.mxu0 0.0
    %244 = vmatprep.subr.mxu0 0.0
    %245 = vmatpush2.msra.mxu0 0.0
    %246 = vmatprep.subr.mxu0 0.0
    %247 = vmatpush2.msra.mxu0 0.0
    %248 = vmatprep.subr.mxu0 0.0
    %249 = vmatpush2.msra.mxu0 0.0
    %250 = vmatprep.subr.mxu0 0.0
    %251 = vmatpush2.msra.mxu0 0.0
    %252 = vmatprep.subr.mxu0 0.0
    %253 = vmatpush2.msra.mxu0 0.0
    %254 = vmatprep.subr.mxu0 0.0
    %255 = vmatpush2.msra.mxu0 0.0
    %256 = vmatprep.subr.mxu0 0.0
    %257 = vmatpush2.msra.mxu0 0.0
    %258 = vmatprep.subr.mxu0 0.0
    %259 = vmatpush2.msra.mxu0 0.0
    %260 = vmatprep.subr.mxu0 0.0
    %261 = vmatpush2.msra.mxu0 0.0
    %262 = vmatprep.subr.mxu0 0.0
    %263 = vmatpush2.msra.mxu0 0.0
    %264 = vmatprep.subr.mxu0 0.0
    %265 = vmatpush2.msra.mxu0 0.0
    %266 = vmatprep.mubr.f32.mxu0 0.0
    %267 = vmatmul.mubr.f32.gmra.mxu0 %v27
    %v268 = vpop.f32.mrf.mxu0
    %v269 = vadd.f32 0.0, %v268
    %v270 = vpop.f32.mrf.mxu0
    %271 = vdwg.mxu0
    %v272 = vmul.f32 %v269, 2.0
    %v273 = vmul.f32 %v130, 1.442695
    %v274 = vpow.pop %v273
    %v275 = vmul.f32 %v201, 1.442695
    %v276 = vpow.pop %v275
    %v277 = vmul.f32 %v272, 1.442695
    %v278 = vpow.pop %v277
    %v279 = vmul.f32 %v26, %v26
    %280 = vadd.xlane.f32.xlu0 %v279
    %v281 = vpop.xlane.xlu0 %280
    %v282 = vmul.f32 %v281, 2.0
    %v283 = vmul.f32 %v282, 1.442695
    %v284 = vpow.pop %v283
    %v285 = vmul.f32 %v26, %v27
    %286 = vadd.xlane.f32.xlu0 %v285
    %v287 = vpop.xlane.xlu0 %286
    %v288 = vmul.f32 %v287, 2.0
    %v289 = vadd.f32 %v274, %v276
    %vm290 = vcmask 64512
    %v291 = vsel %vm290, %v289, 0.0
    %292 = vadd.xlane.f32.xlu0 %v291
    %v293 = vpop.xlane.xlu0 %292
    %v294 = vsub.f32 %v293, %v284
    %v295 = vlog2.pop %v294
    %v296 = vmul.f32 %v295, 0.6931472
    %v297 = vmul.f32 %v288, 2.0
    %v298 = vsub.f32 %v296, %v297
    %v299 = vld [vmem:[#allocation2] sm:$0x1]
    %vm300 = vcmask 7168
    %v301 = vsel %vm300, %v298, 0.0
    %302 = vadd.xlane.f32.xlu0 %v301
    %v303 = vpop.xlane.xlu0 %302
    %v304 = vrot.slane %v303, 4
    %v305 = vadd.f32 %v303, %v304
    %v306 = vrot.slane %v305, 2
    %v307 = vadd.f32 %v305, %v306
    %v308 = vrot.slane %v307, 1
    %v309 = vadd.f32 %v307, %v308
    %s310 = vtos %v309
    %v311 = vstv %s310
    %v312 = vadd.f32 %v299, %v311
    %vm313 = vcmask 0
    %314 = vst.msk [vmem:[#allocation2] sm:$0x1] %vm313, %v312
    %v315 = vld [vmem:[#allocation3] sm:$0x1]
    %v316 = vadd.f32 %v276, %v278
    %v317 = vsel %vm290, %v316, 0.0
    %v318 = vrot.slane %v317, 4
    %v319 = vadd.f32 %v317, %v318
    %v320 = vrot.slane %v319, 2
    %v321 = vadd.f32 %v319, %v320
    %v322 = vrot.slane %v321, 1
    %v323 = vadd.f32 %v321, %v322
    %v324 = vadd.f32 %v315, %v323
    %vm325 = vcmask 57344
    %326 = vst.msk [vmem:[#allocation3] sm:$0x1] %vm325, %v324
    // Predicated region
    $region22: #{tpu_custom_call.1} parent=1 // pred_check
      %p327 = pneg %p18
    $region23: #{tpu_custom_call.1} parent=1 // pred_check_branch
      %329 = sbr.rel (%p327) target = $region25
    $region24: #{tpu_custom_call.1} parent=1 // pred_region
      %v330 = vld [vmem:[%s3] sm:$0xff]
      %v331 = vld [vmem:[%s3 + $0x8] sm:$0xff]
      %v332 = vld [vmem:[%s3 + $0x10] sm:$0xff]
      %v333 = vld [vmem:[%s3 + $0x18] sm:$0xff]
      %v334 = vld [vmem:[%s3 + $0x20] sm:$0xff]
      %v335 = vld [vmem:[%s3 + $0x28] sm:$0xff]
      %v336 = vld [vmem:[%s3 + $0x30] sm:$0xff]
      %v337 = vld [vmem:[%s3 + $0x38] sm:$0xff]
      %v338 = vld [vmem:[%s3 + $0x40] sm:$0xff]
      %v339 = vld [vmem:[%s3 + $0x48] sm:$0xff]
      %v340 = vld [vmem:[%s3 + $0x50] sm:$0xff]
      %v341 = vld [vmem:[%s3 + $0x58] sm:$0xff]
      %v342 = vld [vmem:[%s3 + $0x60] sm:$0xff]
      %v343 = vld [vmem:[%s3 + $0x68] sm:$0xff]
      %v344 = vld [vmem:[%s3 + $0x70] sm:$0xff]
      %v345 = vld [vmem:[%s3 + $0x78] sm:$0xff]
      %v346 = vmul.f32 %v330, %v330
      %v347 = vmul.f32 %v331, %v331
      %v348 = vmul.f32 %v332, %v332
      %v349 = vmul.f32 %v333, %v333
      %v350 = vmul.f32 %v334, %v334
      %v351 = vmul.f32 %v335, %v335
      %v352 = vmul.f32 %v336, %v336
      %v353 = vmul.f32 %v337, %v337
      %v354 = vmul.f32 %v338, %v338
      %v355 = vmul.f32 %v339, %v339
      %v356 = vmul.f32 %v340, %v340
      %v357 = vmul.f32 %v341, %v341
      %v358 = vmul.f32 %v342, %v342
      %v359 = vmul.f32 %v343, %v343
      %v360 = vmul.f32 %v344, %v344
      %v361 = vmul.f32 %v345, %v345
      %v362 = vsel %vm290, %v346, 0.0
      %v363 = vsel %vm290, %v347, 0.0
      %v364 = vadd.f32 %v362, %v363
      %v365 = vsel %vm290, %v348, 0.0
      %v366 = vadd.f32 %v364, %v365
      %v367 = vsel %vm290, %v349, 0.0
      %v368 = vadd.f32 %v366, %v367
      %v369 = vsel %vm290, %v350, 0.0
      %v370 = vadd.f32 %v368, %v369
      %v371 = vsel %vm290, %v351, 0.0
      %v372 = vadd.f32 %v370, %v371
      %v373 = vsel %vm290, %v352, 0.0
      %v374 = vadd.f32 %v372, %v373
      %v375 = vsel %vm290, %v353, 0.0
      %v376 = vadd.f32 %v374, %v375
      %v377 = vsel %vm290, %v354, 0.0
      %v378 = vadd.f32 %v376, %v377
      %v379 = vsel %vm290, %v355, 0.0
      %v380 = vadd.f32 %v378, %v379
      %v381 = vsel %vm290, %v356, 0.0
      %v382 = vadd.f32 %v380, %v381
      %v383 = vsel %vm290, %v357, 0.0
      %v384 = vadd.f32 %v382, %v383
      %v385 = vsel %vm290, %v358, 0.0
      %v386 = vadd.f32 %v384, %v385
      %v387 = vsel %vm290, %v359, 0.0
      %v388 = vadd.f32 %v386, %v387
      %v389 = vsel %vm290, %v360, 0.0
      %v390 = vadd.f32 %v388, %v389
      %v391 = vsel %vm290, %v361, 0.0
      %v392 = vadd.f32 %v390, %v391
      %v393 = vrot.slane %v392, 4
      %v394 = vadd.f32 %v392, %v393
      %v395 = vrot.slane %v394, 2
      %v396 = vadd.f32 %v394, %v395
      %v397 = vrot.slane %v396, 1
      %v398 = vadd.f32 %v396, %v397
      %v399 = vmul.f32 %v398, 2.0
      %v400 = vmul.f32 %v399, 1.442695
      %v401 = vpow.pop %v400
      %v402 = vld [vmem:[#allocation3] sm:$0x1]
      %v403 = vsub.f32 %v402, %v401
      %v404 = vlog2.pop %v403
      %v405 = vmul.f32 %v404, 0.6931472
      %v406 = vld [vmem:[#allocation2] sm:$0x1]
      %v407 = vsel %vm325, %v405, 0.0
      %408 = vadd.xlane.f32.xlu0 %v407
      %v409 = vpop.xlane.xlu0 %408
      %v410 = vrot.slane %v409, 4
      %v411 = vadd.f32 %v409, %v410
      %v412 = vrot.slane %v411, 2
      %v413 = vadd.f32 %v411, %v412
      %v414 = vrot.slane %v413, 1
      %v415 = vadd.f32 %v413, %v414
      %s416 = vtos %v415
      %v417 = vstv %s416
      %v418 = vadd.f32 %v406, %v417
      %v419 = vmul.f32 %v418, 0.0625
      %420 = vst.msk [vmem:[#allocation4] sm:$0x1] %vm313, %v419
    $region25: #{tpu_custom_call.1} parent=1 // pred_fallthru
      _
    // Predicated region
    $region26: #{tpu_custom_call.1} parent=1 // pred_check
      _
    $region27: #{tpu_custom_call.1} parent=1 // pred_check_branch
      %422 = sbr.rel (0) target = $region29
    $region28: #{tpu_custom_call.1} parent=1 // pred_region
      %s424 = ssub.s32 16, 16
      %425 = vsyncadd [#allocation5], %s424
      %s427 = sshll.u32 [#allocation4], 4
      %s428 = int_to_ptr.vmem [resolvable:$true] %s427
      %430 = dma.vmem_to_hbm [thread:$0]  %s428, 16, %s4, [#allocation5]
    $region29: #{tpu_custom_call.1} parent=1 // pred_fallthru
      _
    // Predicated region
    $region30: #{tpu_custom_call.1} parent=1 // pred_check
      _
    $region31: #{tpu_custom_call.1} parent=1 // pred_check_branch
      %432 = sbr.rel (0) target = $region33
    $region32: #{tpu_custom_call.1} parent=1 // pred_region
      %433 = dma.done [#allocation5], 16
    $region33: #{tpu_custom_call.1} parent=1 // pred_fallthru
      _
    %434 = vsyncpa [#allocation5], 1

// kernel: tpu_custom_call.1
$region0: #{tpu_custom_call.1}
  #allocation0 [shape = 'u32[]', space=smem, size = 0x4, offset = 0x4, fixed_abs, tag = 'smem constant byte address 0x4 - core index']
  #allocation1 [shape = 'u32[144,128]{1,0:T(1,128)}', space=vmem, size = 0x12000, scoped, tag = 'internal scratch']
  #allocation2 [shape = 'f32[1,1]{1,0:T(1,128)}', space=vmem, size = 0x200, scoped, tag = 'scratch operand']
  #allocation3 [shape = 'f32[1,8]{1,0:T(1,128)}', space=vmem, size = 0x200, scoped, tag = 'scratch operand']
  %s0 = inlined_call_operand.vmem [shape: f32[8,128], index: 0, kind: input, shape index: {}]
  %s1 = inlined_call_operand.vmem [shape: f32[8,128], index: 1, kind: input, shape index: {}]
  %s2 = inlined_call_operand.vmem [shape: f32[128,8], index: 2, kind: input, shape index: {}]
  %s3 = inlined_call_operand.vmem [shape: f32[128,8], index: 3, kind: input, shape index: {}]
  %s4 = inlined_call_operand.hbm [shape: f32[1,1], index: 4, kind: output, shape index: {}]
  %s5 = sld [smem:[#allocation0]]
  $region34: #{tpu_custom_call.1} parent=0
    _
  %s7 = ssub.s32 1, %s5
  %s8 = scalar_select 0, %s7, %s5
  $region1: #{tpu_custom_call.1} parent=0
    #allocation4 [shape = 'u8[512]{0}', space=vmem, size = 0x400, scoped, tag = 'output window, operand 0, single buffered']
    #allocation5 [shape = 's32[1]{0}', space=sflag, size = 0x4, scoped, tag = 'scoped memory for tpu_custom_call.1']
    %9 = vsyncpa [#allocation5], 0
    // Predicated region
    $region2: #{tpu_custom_call.1} parent=1 // pred_check
      _
    $region3: #{tpu_custom_call.1} parent=1 // pred_check_branch
      %11 = sbr.rel (0) target = $region5
    $region4: #{tpu_custom_call.1} parent=1 // pred_region
      _
    $region5: #{tpu_custom_call.1} parent=1 // pred_fallthru
      _
    // Predicated region
    $region6: #{tpu_custom_call.1} parent=1 // pred_check
      _
    $region7: #{tpu_custom_call.1} parent=1 // pred_check_branch
      %13 = sbr.rel (0) target = $region9
    $region8: #{tpu_custom_call.1} parent=1 // pred_region
      _
    $region9: #{tpu_custom_call.1} parent=1 // pred_fallthru
      _
    // Predicated region
    $region10: #{tpu_custom_call.1} parent=1 // pred_check
      _
    $region11: #{tpu_custom_call.1} parent=1 // pred_check_branch
      %15 = sbr.rel (0) target = $region13
    $region12: #{tpu_custom_call.1} parent=1 // pred_region
      _
    $region13: #{tpu_custom_call.1} parent=1 // pred_fallthru
      _
    // Predicated region
    $region14: #{tpu_custom_call.1} parent=1 // pred_check
      _
    $region15: #{tpu_custom_call.1} parent=1 // pred_check_branch
      %17 = sbr.rel (0) target = $region17
    $region16: #{tpu_custom_call.1} parent=1 // pred_region
      _
    $region17: #{tpu_custom_call.1} parent=1 // pred_fallthru
      _
    %p18 = scmp.eq.s32.totalorder 0, 0
    // Predicated region
    $region18: #{tpu_custom_call.1} parent=1 // pred_check
      %p19 = pneg %p18
    $region19: #{tpu_custom_call.1} parent=1 // pred_check_branch
      %21 = sbr.rel (%p19) target = $region21
    $region20: #{tpu_custom_call.1} parent=1 // pred_region
      %vm22 = vcmask 0
      %23 = vst.msk [vmem:[#allocation2] sm:$0x1] %vm22, 0.0
      %vm24 = vcmask 57344
      %25 = vst.msk [vmem:[#allocation3] sm:$0x1] %vm24, 0.0
    $region21: #{tpu_custom_call.1} parent=1 // pred_fallthru
      _
    %v26 = vld [vmem:[%s0] sm:$0xff]
    %v27 = vld [vmem:[%s1] sm:$0xff]
    %v28 = vld [vmem:[%s2] sm:$0xff]
    %v29 = vld [vmem:[%s2 + $0x8] sm:$0xff]
    %v30 = vld [vmem:[%s2 + $0x10] sm:$0xff]
    %v31 = vld [vmem:[%s2 + $0x18] sm:$0xff]
    %v32 = vld [vmem:[%s2 + $0x20] sm:$0xff]
    %v33 = vld [vmem:[%s2 + $0x28] sm:$0xff]
    %v34 = vld [vmem:[%s2 + $0x30] sm:$0xff]
    %v35 = vld [vmem:[%s2 + $0x38] sm:$0xff]
    %v36 = vld [vmem:[%s2 + $0x40] sm:$0xff]
    %v37 = vld [vmem:[%s2 + $0x48] sm:$0xff]
    %v38 = vld [vmem:[%s2 + $0x50] sm:$0xff]
    %v39 = vld [vmem:[%s2 + $0x58] sm:$0xff]
    %v40 = vld [vmem:[%s2 + $0x60] sm:$0xff]
    %v41 = vld [vmem:[%s2 + $0x68] sm:$0xff]
    %v42 = vld [vmem:[%s2 + $0x70] sm:$0xff]
    %v43 = vld [vmem:[%s2 + $0x78] sm:$0xff]
    %v44 = vld [vmem:[%s3] sm:$0xff]
    %v45 = vld [vmem:[%s3 + $0x8] sm:$0xff]
    %v46 = vld [vmem:[%s3 + $0x10] sm:$0xff]
    %v47 = vld [vmem:[%s3 + $0x18] sm:$0xff]
    %v48 = vld [vmem:[%s3 + $0x20] sm:$0xff]
    %v49 = vld [vmem:[%s3 + $0x28] sm:$0xff]
    %v50 = vld [vmem:[%s3 + $0x30] sm:$0xff]
    %v51 = vld [vmem:[%s3 + $0x38] sm:$0xff]
    %v52 = vld [vmem:[%s3 + $0x40] sm:$0xff]
    %v53 = vld [vmem:[%s3 + $0x48] sm:$0xff]
    %v54 = vld [vmem:[%s3 + $0x50] sm:$0xff]
    %v55 = vld [vmem:[%s3 + $0x58] sm:$0xff]
    %v56 = vld [vmem:[%s3 + $0x60] sm:$0xff]
    %v57 = vld [vmem:[%s3 + $0x68] sm:$0xff]
    %v58 = vld [vmem:[%s3 + $0x70] sm:$0xff]
    %v59 = vld [vmem:[%s3 + $0x78] sm:$0xff]
    %60 = vmatprep.subr.mxu0 0.0
    %61 = vmatpush1.msra.mxu0 %v43
    %62 = vmatprep.subr.mxu0 0.0
    %63 = vmatpush1.msra.mxu0 %v42
    %64 = vmatprep.subr.mxu0 0.0
    %65 = vmatpush1.msra.mxu0 %v41
    %66 = vmatprep.subr.mxu0 0.0
    %67 = vmatpush1.msra.mxu0 %v40
    %68 = vmatprep.subr.mxu0 0.0
    %69 = vmatpush1.msra.mxu0 %v39
    %70 = vmatprep.subr.mxu0 0.0
    %71 = vmatpush1.msra.mxu0 %v38
    %72 = vmatprep.subr.mxu0 0.0
    %73 = vmatpush1.msra.mxu0 %v37
    %74 = vmatprep.subr.mxu0 0.0
    %75 = vmatpush1.msra.mxu0 %v36
    %76 = vmatprep.subr.mxu0 0.0
    %77 = vmatpush1.msra.mxu0 %v35
    %78 = vmatprep.subr.mxu0 0.0
    %79 = vmatpush1.msra.mxu0 %v34
    %80 = vmatprep.subr.mxu0 0.0
    %81 = vmatpush1.msra.mxu0 %v33
    %82 = vmatprep.subr.mxu0 0.0
    %83 = vmatpush1.msra.mxu0 %v32
    %84 = vmatprep.subr.mxu0 0.0
    %85 = vmatpush1.msra.mxu0 %v31
    %86 = vmatprep.subr.mxu0 0.0
    %87 = vmatpush1.msra.mxu0 %v30
    %88 = vmatprep.subr.mxu0 0.0
    %89 = vmatpush1.msra.mxu0 %v29
    %90 = vmatprep.subr.mxu0 0.0
    %91 = vmatpush1.msra.mxu0 %v28
    %92 = vmatprep.subr.mxu0 0.0
    %93 = vmatpush2.msra.mxu0 0.0
    %94 = vmatprep.subr.mxu0 0.0
    %95 = vmatpush2.msra.mxu0 0.0
    %96 = vmatprep.subr.mxu0 0.0
    %97 = vmatpush2.msra.mxu0 0.0
    %98 = vmatprep.subr.mxu0 0.0
    %99 = vmatpush2.msra.mxu0 0.0
    %100 = vmatprep.subr.mxu0 0.0
    %101 = vmatpush2.msra.mxu0 0.0
    %102 = vmatprep.subr.mxu0 0.0
    %103 = vmatpush2.msra.mxu0 0.0
    %104 = vmatprep.subr.mxu0 0.0
    %105 = vmatpush2.msra.mxu0 0.0
    %106 = vmatprep.subr.mxu0 0.0
    %107 = vmatpush2.msra.mxu0 0.0
    %108 = vmatprep.subr.mxu0 0.0
    %109 = vmatpush2.msra.mxu0 0.0
    %110 = vmatprep.subr.mxu0 0.0
    %111 = vmatpush2.msra.mxu0 0.0
    %112 = vmatprep.subr.mxu0 0.0
    %113 = vmatpush2.msra.mxu0 0.0
    %114 = vmatprep.subr.mxu0 0.0
    %115 = vmatpush2.msra.mxu0 0.0
    %116 = vmatprep.subr.mxu0 0.0
    %117 = vmatpush2.msra.mxu0 0.0
    %118 = vmatprep.subr.mxu0 0.0
    %119 = vmatpush2.msra.mxu0 0.0
    %120 = vmatprep.subr.mxu0 0.0
    %121 = vmatpush2.msra.mxu0 0.0
    %122 = vmatprep.subr.mxu0 0.0
    %123 = vmatpush2.msra.mxu0 0.0
    %124 = vmatprep.mubr.f32.mxu0 0.0
    %125 = vmatmul.mubr.f32.gmra.mxu0 %v26
    %v126 = vpop.f32.mrf.mxu0
    %v127 = vadd.f32 0.0, %v126
    %v128 = vpop.f32.mrf.mxu0
    %129 = vdwg.mxu0
    %v130 = vmul.f32 %v127, 2.0
    %131 = vmatprep.subr.mxu0 0.0
    %132 = vmatpush1.msra.mxu0 %v59
    %133 = vmatprep.subr.mxu0 0.0
    %134 = vmatpush1.msra.mxu0 %v58
    %135 = vmatprep.subr.mxu0 0.0
    %136 = vmatpush1.msra.mxu0 %v57
    %137 = vmatprep.subr.mxu0 0.0
    %138 = vmatpush1.msra.mxu0 %v56
    %139 = vmatprep.subr.mxu0 0.0
    %140 = vmatpush1.msra.mxu0 %v55
    %141 = vmatprep.subr.mxu0 0.0
    %142 = vmatpush1.msra.mxu0 %v54
    %143 = vmatprep.subr.mxu0 0.0
    %144 = vmatpush1.msra.mxu0 %v53
    %145 = vmatprep.subr.mxu0 0.0
    %146 = vmatpush1.msra.mxu0 %v52
    %147 = vmatprep.subr.mxu0 0.0
    %148 = vmatpush1.msra.mxu0 %v51
    %149 = vmatprep.subr.mxu0 0.0
    %150 = vmatpush1.msra.mxu0 %v50
    %151 = vmatprep.subr.mxu0 0.0
    %152 = vmatpush1.msra.mxu0 %v49
    %153 = vmatprep.subr.mxu0 0.0
    %154 = vmatpush1.msra.mxu0 %v48
    %155 = vmatprep.subr.mxu0 0.0
    %156 = vmatpush1.msra.mxu0 %v47
    %157 = vmatprep.subr.mxu0 0.0
    %158 = vmatpush1.msra.mxu0 %v46
    %159 = vmatprep.subr.mxu0 0.0
    %160 = vmatpush1.msra.mxu0 %v45
    %161 = vmatprep.subr.mxu0 0.0
    %162 = vmatpush1.msra.mxu0 %v44
    %163 = vmatprep.subr.mxu0 0.0
    %164 = vmatpush2.msra.mxu0 0.0
    %165 = vmatprep.subr.mxu0 0.0
    %166 = vmatpush2.msra.mxu0 0.0
    %167 = vmatprep.subr.mxu0 0.0
    %168 = vmatpush2.msra.mxu0 0.0
    %169 = vmatprep.subr.mxu0 0.0
    %170 = vmatpush2.msra.mxu0 0.0
    %171 = vmatprep.subr.mxu0 0.0
    %172 = vmatpush2.msra.mxu0 0.0
    %173 = vmatprep.subr.mxu0 0.0
    %174 = vmatpush2.msra.mxu0 0.0
    %175 = vmatprep.subr.mxu0 0.0
    %176 = vmatpush2.msra.mxu0 0.0
    %177 = vmatprep.subr.mxu0 0.0
    %178 = vmatpush2.msra.mxu0 0.0
    %179 = vmatprep.subr.mxu0 0.0
    %180 = vmatpush2.msra.mxu0 0.0
    %181 = vmatprep.subr.mxu0 0.0
    %182 = vmatpush2.msra.mxu0 0.0
    %183 = vmatprep.subr.mxu0 0.0
    %184 = vmatpush2.msra.mxu0 0.0
    %185 = vmatprep.subr.mxu0 0.0
    %186 = vmatpush2.msra.mxu0 0.0
    %187 = vmatprep.subr.mxu0 0.0
    %188 = vmatpush2.msra.mxu0 0.0
    %189 = vmatprep.subr.mxu0 0.0
    %190 = vmatpush2.msra.mxu0 0.0
    %191 = vmatprep.subr.mxu0 0.0
    %192 = vmatpush2.msra.mxu0 0.0
    %193 = vmatprep.subr.mxu0 0.0
    %194 = vmatpush2.msra.mxu0 0.0
    %195 = vmatprep.mubr.f32.mxu0 0.0
    %196 = vmatmul.mubr.f32.gmra.mxu0 %v26
    %v197 = vpop.f32.mrf.mxu0
    %v198 = vadd.f32 0.0, %v197
    %v199 = vpop.f32.mrf.mxu0
    %200 = vdwg.mxu0
    %v201 = vmul.f32 %v198, 2.0
    %202 = vmatprep.subr.mxu0 0.0
    %203 = vmatpush1.msra.mxu0 %v59
    %204 = vmatprep.subr.mxu0 0.0
    %205 = vmatpush1.msra.mxu0 %v58
    %206 = vmatprep.subr.mxu0 0.0
    %207 = vmatpush1.msra.mxu0 %v57
    %208 = vmatprep.subr.mxu0 0.0
    %209 = vmatpush1.msra.mxu0 %v56
    %210 = vmatprep.subr.mxu0 0.0
    %211 = vmatpush1.msra.mxu0 %v55
    %212 = vmatprep.subr.mxu0 0.0
    %213 = vmatpush1.msra.mxu0 %v54
    %214 = vmatprep.subr.mxu0 0.0
    %215 = vmatpush1.msra.mxu0 %v53
    %216 = vmatprep.subr.mxu0 0.0
    %217 = vmatpush1.msra.mxu0 %v52
    %218 = vmatprep.subr.mxu0 0.0
    %219 = vmatpush1.msra.mxu0 %v51
    %220 = vmatprep.subr.mxu0 0.0
    %221 = vmatpush1.msra.mxu0 %v50
    %222 = vmatprep.subr.mxu0 0.0
    %223 = vmatpush1.msra.mxu0 %v49
    %224 = vmatprep.subr.mxu0 0.0
    %225 = vmatpush1.msra.mxu0 %v48
    %226 = vmatprep.subr.mxu0 0.0
    %227 = vmatpush1.msra.mxu0 %v47
    %228 = vmatprep.subr.mxu0 0.0
    %229 = vmatpush1.msra.mxu0 %v46
    %230 = vmatprep.subr.mxu0 0.0
    %231 = vmatpush1.msra.mxu0 %v45
    %232 = vmatprep.subr.mxu0 0.0
    %233 = vmatpush1.msra.mxu0 %v44
    %234 = vmatprep.subr.mxu0 0.0
    %235 = vmatpush2.msra.mxu0 0.0
    %236 = vmatprep.subr.mxu0 0.0
    %237 = vmatpush2.msra.mxu0 0.0
    %238 = vmatprep.subr.mxu0 0.0
    %239 = vmatpush2.msra.mxu0 0.0
    %240 = vmatprep.subr.mxu0 0.0
    %241 = vmatpush2.msra.mxu0 0.0
    %242 = vmatprep.subr.mxu0 0.0
    %243 = vmatpush2.msra.mxu0 0.0
    %244 = vmatprep.subr.mxu0 0.0
    %245 = vmatpush2.msra.mxu0 0.0
    %246 = vmatprep.subr.mxu0 0.0
    %247 = vmatpush2.msra.mxu0 0.0
    %248 = vmatprep.subr.mxu0 0.0
    %249 = vmatpush2.msra.mxu0 0.0
    %250 = vmatprep.subr.mxu0 0.0
    %251 = vmatpush2.msra.mxu0 0.0
    %252 = vmatprep.subr.mxu0 0.0
    %253 = vmatpush2.msra.mxu0 0.0
    %254 = vmatprep.subr.mxu0 0.0
    %255 = vmatpush2.msra.mxu0 0.0
    %256 = vmatprep.subr.mxu0 0.0
    %257 = vmatpush2.msra.mxu0 0.0
    %258 = vmatprep.subr.mxu0 0.0
    %259 = vmatpush2.msra.mxu0 0.0
    %260 = vmatprep.subr.mxu0 0.0
    %261 = vmatpush2.msra.mxu0 0.0
    %262 = vmatprep.subr.mxu0 0.0
    %263 = vmatpush2.msra.mxu0 0.0
    %264 = vmatprep.subr.mxu0 0.0
    %265 = vmatpush2.msra.mxu0 0.0
    %266 = vmatprep.mubr.f32.mxu0 0.0
    %267 = vmatmul.mubr.f32.gmra.mxu0 %v27
    %v268 = vpop.f32.mrf.mxu0
    %v269 = vadd.f32 0.0, %v268
    %v270 = vpop.f32.mrf.mxu0
    %271 = vdwg.mxu0
    %v272 = vmul.f32 %v269, 2.0
    %v273 = vmul.f32 %v130, 1.442695
    %v274 = vpow.pop %v273
    %v275 = vmul.f32 %v201, 1.442695
    %v276 = vpow.pop %v275
    %v277 = vmul.f32 %v272, 1.442695
    %v278 = vpow.pop %v277
    %v279 = vmul.f32 %v26, %v26
    %280 = vadd.xlane.f32.xlu0 %v279
    %v281 = vpop.xlane.xlu0 %280
    %v282 = vmul.f32 %v281, 2.0
    %v283 = vmul.f32 %v282, 1.442695
    %v284 = vpow.pop %v283
    %v285 = vmul.f32 %v26, %v27
    %286 = vadd.xlane.f32.xlu0 %v285
    %v287 = vpop.xlane.xlu0 %286
    %v288 = vmul.f32 %v287, 2.0
    %v289 = vadd.f32 %v274, %v276
    %vm290 = vcmask 64512
    %v291 = vsel %vm290, %v289, 0.0
    %292 = vadd.xlane.f32.xlu0 %v291
    %v293 = vpop.xlane.xlu0 %292
    %v294 = vsub.f32 %v293, %v284
    %v295 = vlog2.pop %v294
    %v296 = vmul.f32 %v295, 0.6931472
    %v297 = vmul.f32 %v288, 2.0
    %v298 = vsub.f32 %v296, %v297
    %v299 = vld [vmem:[#allocation2] sm:$0x1]
    %vm300 = vcmask 7168
    %v301 = vsel %vm300, %v298, 0.0
    %302 = vadd.xlane.f32.xlu0 %v301
    %v303 = vpop.xlane.xlu0 %302
    %v304 = vrot.slane %v303, 4
    %v305 = vadd.f32 %v303, %v304
    %v306 = vrot.slane %v305, 2
    %v307 = vadd.f32 %v305, %v306
    %v308 = vrot.slane %v307, 1
    %v309 = vadd.f32 %v307, %v308
    %s310 = vtos %v309
    %v311 = vstv %s310
    %v312 = vadd.f32 %v299, %v311
    %vm313 = vcmask 0
    %314 = vst.msk [vmem:[#allocation2] sm:$0x1] %vm313, %v312
    %v315 = vld [vmem:[#allocation3] sm:$0x1]
    %v316 = vadd.f32 %v276, %v278
    %v317 = vsel %vm290, %v316, 0.0
    %v318 = vrot.slane %v317, 4
    %v319 = vadd.f32 %v317, %v318
    %v320 = vrot.slane %v319, 2
    %v321 = vadd.f32 %v319, %v320
    %v322 = vrot.slane %v321, 1
    %v323 = vadd.f32 %v321, %v322
    %v324 = vadd.f32 %v315, %v323
    %vm325 = vcmask 57344
    %326 = vst.msk [vmem:[#allocation3] sm:$0x1] %vm325, %v324
    // Predicated region
    $region22: #{tpu_custom_call.1} parent=1 // pred_check
      %p327 = pneg %p18
    $region23: #{tpu_custom_call.1} parent=1 // pred_check_branch
      %329 = sbr.rel (%p327) target = $region25
    $region24: #{tpu_custom_call.1} parent=1 // pred_region
      %v330 = vld [vmem:[%s3] sm:$0xff]
      %v331 = vld [vmem:[%s3 + $0x8] sm:$0xff]
      %v332 = vld [vmem:[%s3 + $0x10] sm:$0xff]
      %v333 = vld [vmem:[%s3 + $0x18] sm:$0xff]
      %v334 = vld [vmem:[%s3 + $0x20] sm:$0xff]
      %v335 = vld [vmem:[%s3 + $0x28] sm:$0xff]
      %v336 = vld [vmem:[%s3 + $0x30] sm:$0xff]
      %v337 = vld [vmem:[%s3 + $0x38] sm:$0xff]
      %v338 = vld [vmem:[%s3 + $0x40] sm:$0xff]
      %v339 = vld [vmem:[%s3 + $0x48] sm:$0xff]
      %v340 = vld [vmem:[%s3 + $0x50] sm:$0xff]
      %v341 = vld [vmem:[%s3 + $0x58] sm:$0xff]
      %v342 = vld [vmem:[%s3 + $0x60] sm:$0xff]
      %v343 = vld [vmem:[%s3 + $0x68] sm:$0xff]
      %v344 = vld [vmem:[%s3 + $0x70] sm:$0xff]
      %v345 = vld [vmem:[%s3 + $0x78] sm:$0xff]
      %v346 = vmul.f32 %v330, %v330
      %v347 = vmul.f32 %v331, %v331
      %v348 = vmul.f32 %v332, %v332
      %v349 = vmul.f32 %v333, %v333
      %v350 = vmul.f32 %v334, %v334
      %v351 = vmul.f32 %v335, %v335
      %v352 = vmul.f32 %v336, %v336
      %v353 = vmul.f32 %v337, %v337
      %v354 = vmul.f32 %v338, %v338
      %v355 = vmul.f32 %v339, %v339
      %v356 = vmul.f32 %v340, %v340
      %v357 = vmul.f32 %v341, %v341
      %v358 = vmul.f32 %v342, %v342
      %v359 = vmul.f32 %v343, %v343
      %v360 = vmul.f32 %v344, %v344
      %v361 = vmul.f32 %v345, %v345
      %v362 = vsel %vm290, %v346, 0.0
      %v363 = vsel %vm290, %v347, 0.0
      %v364 = vadd.f32 %v362, %v363
      %v365 = vsel %vm290, %v348, 0.0
      %v366 = vadd.f32 %v364, %v365
      %v367 = vsel %vm290, %v349, 0.0
      %v368 = vadd.f32 %v366, %v367
      %v369 = vsel %vm290, %v350, 0.0
      %v370 = vadd.f32 %v368, %v369
      %v371 = vsel %vm290, %v351, 0.0
      %v372 = vadd.f32 %v370, %v371
      %v373 = vsel %vm290, %v352, 0.0
      %v374 = vadd.f32 %v372, %v373
      %v375 = vsel %vm290, %v353, 0.0
      %v376 = vadd.f32 %v374, %v375
      %v377 = vsel %vm290, %v354, 0.0
      %v378 = vadd.f32 %v376, %v377
      %v379 = vsel %vm290, %v355, 0.0
      %v380 = vadd.f32 %v378, %v379
      %v381 = vsel %vm290, %v356, 0.0
      %v382 = vadd.f32 %v380, %v381
      %v383 = vsel %vm290, %v357, 0.0
      %v384 = vadd.f32 %v382, %v383
      %v385 = vsel %vm290, %v358, 0.0
      %v386 = vadd.f32 %v384, %v385
      %v387 = vsel %vm290, %v359, 0.0
      %v388 = vadd.f32 %v386, %v387
      %v389 = vsel %vm290, %v360, 0.0
      %v390 = vadd.f32 %v388, %v389
      %v391 = vsel %vm290, %v361, 0.0
      %v392 = vadd.f32 %v390, %v391
      %v393 = vrot.slane %v392, 4
      %v394 = vadd.f32 %v392, %v393
      %v395 = vrot.slane %v394, 2
      %v396 = vadd.f32 %v394, %v395
      %v397 = vrot.slane %v396, 1
      %v398 = vadd.f32 %v396, %v397
      %v399 = vmul.f32 %v398, 2.0
      %v400 = vmul.f32 %v399, 1.442695
      %v401 = vpow.pop %v400
      %v402 = vld [vmem:[#allocation3] sm:$0x1]
      %v403 = vsub.f32 %v402, %v401
      %v404 = vlog2.pop %v403
      %v405 = vmul.f32 %v404, 0.6931472
      %v406 = vld [vmem:[#allocation2] sm:$0x1]
      %v407 = vsel %vm325, %v405, 0.0
      %408 = vadd.xlane.f32.xlu0 %v407
      %v409 = vpop.xlane.xlu0 %408
      %v410 = vrot.slane %v409, 4
      %v411 = vadd.f32 %v409, %v410
      %v412 = vrot.slane %v411, 2
      %v413 = vadd.f32 %v411, %v412
      %v414 = vrot.slane %v413, 1
      %v415 = vadd.f32 %v413, %v414
      %s416 = vtos %v415
      %v417 = vstv %s416
      %v418 = vadd.f32 %v406, %v417
      %v419 = vmul.f32 %v418, 0.0625
      %420 = vst.msk [vmem:[#allocation4] sm:$0x1] %vm313, %v419
    $region25: #{tpu_custom_call.1} parent=1 // pred_fallthru
      _
    // Predicated region
    $region26: #{tpu_custom_call.1} parent=1 // pred_check
      _
    $region27: #{tpu_custom_call.1} parent=1 // pred_check_branch
      %422 = sbr.rel (0) target = $region29
    $region28: #{tpu_custom_call.1} parent=1 // pred_region
      %s424 = ssub.s32 16, 16
      %425 = vsyncadd [#allocation5], %s424
      %s427 = sshll.u32 [#allocation4], 4
      %s428 = int_to_ptr.vmem [resolvable:$true] %s427
      %430 = dma.vmem_to_hbm [thread:$0]  %s428, 16, %s4, [#allocation5]
    $region29: #{tpu_custom_call.1} parent=1 // pred_fallthru
      _
    // Predicated region
    $region30: #{tpu_custom_call.1} parent=1 // pred_check
      _
    $region31: #{tpu_custom_call.1} parent=1 // pred_check_branch
      %432 = sbr.rel (0) target = $region33
    $region32: #{tpu_custom_call.1} parent=1 // pred_region
      %433 = dma.done [#allocation5], 16
    $region33: #{tpu_custom_call.1} parent=1 // pred_fallthru
      _
    %434 = vsyncpa [#allocation5], 1

</llo_original>
